<compile_context>
chip_gen: v5e
topology: v5e:2x2
jax: 0.10.0
libtpu: 0.0.40
codegen_flags: <defaults>
</compile_context>

<pallas_src>
import math

import numpy as np
import jax
import jax.numpy as jnp
from jax import lax
from jax.experimental import pallas as pl
from jax.experimental.pallas import tpu as pltpu


# ----------------------------------------------------------------------------
# Pallas kernel: one (batch-chunk, time-chunk) grid step of the LSTM recurrence
# plus last-valid-step selection and (on the final time chunk) linear decode.
# ----------------------------------------------------------------------------
def _lstm_cls_kernel(emb_ref,      # (Tc, Bc, ninp)  bf16, time-major chunk
                     lens_ref,     # (Bc, 1) int32   sequence lengths
                     w_ih_ref,     # (ninp, 4H)      bf16
                     w_hh_ref,     # (H, 4H)         bf16
                     b_ref,        # (1, 4H)         f32  (b_ih + b_hh)
                     dec_w_ref,    # (H, LPAD)       f32  (lane-padded decoder)
                     dec_b_ref,    # (1, LPAD)       f32
                     out_ref,      # (Bc, LPAD)      f32
                     xp_ref,       # scratch (Tc, Bc, 4H) f32
                     h_ref,        # scratch (Bc, H) f32   carried across T-chunks
                     c_ref,        # scratch (Bc, H) f32
                     e_ref):       # scratch (Bc, H) f32   selected seq_end state
    Tc, Bc, _ = emb_ref.shape
    H = w_hh_ref.shape[0]
    ti = pl.program_id(1)
    n_t = pl.num_programs(1)

    # Start of a new batch chunk -> reset carried state.
    @pl.when(ti == 0)
    def _():
        h_ref[...] = jnp.zeros_like(h_ref)
        c_ref[...] = jnp.zeros_like(c_ref)
        e_ref[...] = jnp.zeros_like(e_ref)

    # Input projection for every timestep in this chunk, off the serial chain.
    # Static Python loop of rank-2 MXU matmuls (gate order: [i | f | g | o]).
    w_ih = w_ih_ref[...]
    bias = b_ref[...]
    for t in range(Tc):
        xp_ref[t] = jnp.dot(emb_ref[t], w_ih,
                            preferred_element_type=jnp.float32) + bias

    # Hoisted loop invariants (JAX does not CSE broadcasts inside the loop).
    w_hh = w_hh_ref[...]                                        # (H, 4H) bf16
    lens_bh = jnp.broadcast_to(lens_ref[...], (Bc, H))          # (Bc, H) int32
    t0 = ti * Tc

    def step(t, carry):
        h, c, seq_end = carry
        gates = xp_ref[t] + jnp.dot(h.astype(jnp.bfloat16), w_hh,
                                    preferred_element_type=jnp.float32)  # (Bc,4H)
        # Full-width transcendentals, then slice (halves EUP passes per step).
        sig = jax.nn.sigmoid(gates)
        tnh = jnp.tanh(gates)
        i_g = sig[:, 0 * H:1 * H]
        f_g = sig[:, 1 * H:2 * H]
        g_g = tnh[:, 2 * H:3 * H]
        o_g = sig[:, 3 * H:4 * H]
        c = f_g * c + i_g * g_g
        h = o_g * jnp.tanh(c)
        # Equivalent of pack/pad + output[arange(B), length-1].
        take = lens_bh == (t0 + t + 1)
        seq_end = jnp.where(take, h, seq_end)
        return h, c, seq_end

    h, c, seq_end = lax.fori_loop(
        0, Tc, step, (h_ref[...], c_ref[...], e_ref[...]),
        unroll=Tc if Tc <= 8 else 8)
    h_ref[...] = h
    c_ref[...] = c
    e_ref[...] = seq_end

    # Final time chunk of this batch chunk: decode and store (lane-dense slab).
    @pl.when(ti == n_t - 1)
    def _():
        out_ref[...] = (
            jnp.dot(seq_end, dec_w_ref[...], preferred_element_type=jnp.float32)
            + dec_b_ref[...])


# ----------------------------------------------------------------------------
# wrapper: embedding gather + layout prep (XLA glue); recurrence in the kernel
# ----------------------------------------------------------------------------
def rnn_sequence_classification_forward(sentences, masks, params, *,
                                        batch_chunk=16, time_chunk=8):
    B, T = sentences.shape
    enc_w = params["encoder_weight"].astype(jnp.float32)        # (ntokens+2, ninp)
    ninp = enc_w.shape[1]
    w_ih = params["w_ih"]                                       # (4H, ninp)
    w_hh = params["w_hh"]                                       # (4H, H)
    H4 = w_ih.shape[0]
    H = H4 // 4
    dec_w = params["dec_w"]                                     # (nlabels, H)
    nlabels = dec_w.shape[0]

    Bc = batch_chunk                                            # multiple of 16
    Tc = time_chunk
    B_pad = -(-B // Bc) * Bc
    T_pad = -(-T // Tc) * Tc
    LPAD = -(-nlabels // 128) * 128                             # lane-dense output

    # Sequence lengths (contiguous-prefix masks, as pack_padded_sequence needs).
    lengths = jnp.sum(masks, axis=1).astype(jnp.int32)
    lengths = jnp.pad(lengths, (0, B_pad - B)).reshape(B_pad, 1)

    # Time-major embedding gather directly (transpose int ids, not floats),
    # in bf16 to halve HBM->VMEM DMA bytes; dropout p=0 is the identity.
    ids = jnp.pad(sentences.astype(jnp.int32).T,
                  ((0, T_pad - T), (0, B_pad - B)))              # (T_pad, B_pad)
    emb_tb = enc_w.astype(jnp.bfloat16)[ids]                     # (T_pad, B_pad, ninp)

    bias = (params["b_ih"] + params["b_hh"]).astype(jnp.float32).reshape(1, H4)
    dec_w_p = jnp.zeros((H, LPAD), jnp.float32).at[:, :nlabels].set(
        dec_w.astype(jnp.float32).T)
    dec_b_p = jnp.zeros((1, LPAD), jnp.float32).at[0, :nlabels].set(
        params["dec_b"].astype(jnp.float32))

    n_b = B_pad // Bc
    n_t = T_pad // Tc

    out = pl.pallas_call(
        _lstm_cls_kernel,
        out_shape=jax.ShapeDtypeStruct((B_pad, LPAD), jnp.float32),
        grid=(n_b, n_t),
        in_specs=[
            pl.BlockSpec((Tc, Bc, ninp), lambda bi, ti: (ti, bi, 0)),
            pl.BlockSpec((Bc, 1),        lambda bi, ti: (bi, 0)),
            pl.BlockSpec((ninp, H4),     lambda bi, ti: (0, 0)),
            pl.BlockSpec((H, H4),        lambda bi, ti: (0, 0)),
            pl.BlockSpec((1, H4),        lambda bi, ti: (0, 0)),
            pl.BlockSpec((H, LPAD),      lambda bi, ti: (0, 0)),
            pl.BlockSpec((1, LPAD),      lambda bi, ti: (0, 0)),
        ],
        out_specs=pl.BlockSpec((Bc, LPAD), lambda bi, ti: (bi, 0)),
        scratch_shapes=[
            pltpu.VMEM((Tc, Bc, H4), jnp.float32),   # per-chunk input projection
            pltpu.VMEM((Bc, H), jnp.float32),        # h  (carried across T-chunks)
            pltpu.VMEM((Bc, H), jnp.float32),        # c
            pltpu.VMEM((Bc, H), jnp.float32),        # seq_end
        ],
        compiler_params=pltpu.CompilerParams(
            dimension_semantics=("parallel", "arbitrary"),
            vmem_limit_bytes=32 * 1024 * 1024),
    )(emb_tb, lengths,
      w_ih.astype(jnp.bfloat16).T, w_hh.astype(jnp.bfloat16).T,
      bias, dec_w_p, dec_b_p)
    return out[:B, :nlabels]


# ----------------------------------------------------------------------------
# pure-JAX f32 reference (mirrors the PyTorch forward) for correctness check
# ----------------------------------------------------------------------------
def rnn_sequence_classification_ref(sentences, masks, params):
    enc_w = params["encoder_weight"].astype(jnp.float32)
    w_ih_T = params["w_ih"].astype(jnp.float32).T
    w_hh_T = params["w_hh"].astype(jnp.float32).T
    bias = (params["b_ih"] + params["b_hh"]).reshape(1, -1).astype(jnp.float32)
    dec_w_T = params["dec_w"].astype(jnp.float32).T
    dec_b = params["dec_b"].reshape(1, -1).astype(jnp.float32)

    B, T = sentences.shape
    H = w_hh_T.shape[0]
    lengths = jnp.sum(masks, axis=1).astype(jnp.int32).reshape(B, 1)
    emb = enc_w[sentences.astype(jnp.int32)]                    # (B, T, ninp)

    h = jnp.zeros((B, H), jnp.float32)
    c = jnp.zeros((B, H), jnp.float32)
    seq_end = jnp.zeros((B, H), jnp.float32)
    for t in range(T):
        gates = emb[:, t, :] @ w_ih_T + h @ w_hh_T + bias
        i_g = jax.nn.sigmoid(gates[:, 0:H])
        f_g = jax.nn.sigmoid(gates[:, H:2 * H])
        g_g = jnp.tanh(gates[:, 2 * H:3 * H])
        o_g = jax.nn.sigmoid(gates[:, 3 * H:4 * H])
        c = f_g * c + i_g * g_g
        h = o_g * jnp.tanh(c)
        seq_end = jnp.where(lengths == (t + 1), h, seq_end)
    return seq_end @ dec_w_T + dec_b


# ----------------------------------------------------------------------------
def make_params(key, ntokens, nlabels, ninp, nhid):
    """Synthetic init mirroring the module's parameter shapes / init ranges."""
    n_emb = ntokens + 2
    ks = jax.random.split(key, 6)
    initrange = 0.1
    stdv = 1.0 / math.sqrt(nhid)
    return dict(
        encoder_weight=jax.random.uniform(ks[0], (n_emb, ninp), jnp.float32,
                                          -initrange, initrange),
        w_ih=jax.random.uniform(ks[1], (4 * nhid, ninp), jnp.float32, -stdv, stdv),
        w_hh=jax.random.uniform(ks[2], (4 * nhid, nhid), jnp.float32, -stdv, stdv),
        b_ih=jax.random.uniform(ks[3], (4 * nhid,), jnp.float32, -stdv, stdv),
        b_hh=jax.random.uniform(ks[4], (4 * nhid,), jnp.float32, -stdv, stdv),
        dec_w=jax.random.uniform(ks[5], (nlabels, nhid), jnp.float32,
                                 -initrange, initrange),
        dec_b=jnp.zeros((nlabels,), jnp.float32),     # decoder.bias zeroed in init
    )


if __name__ == "__main__":
    ntokens, nlabels, ninp, nhid = 16, 4, 32, 32      # 4*nhid = 128 -> full lanes
    B, T = 32, 16                                     # 2 batch chunks x 2 T-chunks

    key = jax.random.PRNGKey(0)
    pkey, skey, lkey = jax.random.split(key, 3)
    params = make_params(pkey, ntokens, nlabels, ninp, nhid)
    sentences = jax.random.randint(skey, (B, T), 0, ntokens + 2, dtype=jnp.int32)
    lengths = jax.random.randint(lkey, (B,), 3, T + 1, dtype=jnp.int32)
    masks = (jnp.arange(T)[None, :] < lengths[:, None]).astype(jnp.float32)

    out = rnn_sequence_classification_forward(sentences, masks, params,
                                              batch_chunk=16, time_chunk=8)
    out = jax.block_until_ready(out)

    ref = rnn_sequence_classification_ref(sentences, masks, params)
    assert out.shape == (B, nlabels)
    assert np.all(np.isfinite(np.asarray(out)))
    # bf16 MXU operands in the kernel vs pure-f32 reference -> ~1e-3 level noise.
    np.testing.assert_allclose(np.asarray(out), np.asarray(ref),
                               rtol=1e-2, atol=1e-2)
    print("KERNEL_OK")
</pallas_src>

<mosaic_0001>
module attributes {stable_mosaic.version = 11 : i64} {
  func.func @_lstm_cls_kernel(%arg0: i32, %arg1: i32, %arg2: memref<8x16x32xbf16, #tpu.memory_space<vmem>>, %arg3: memref<16x1xi32, #tpu.memory_space<vmem>>, %arg4: memref<32x128xbf16, #tpu.memory_space<vmem>>, %arg5: memref<32x128xbf16, #tpu.memory_space<vmem>>, %arg6: memref<1x128xf32, #tpu.memory_space<vmem>>, %arg7: memref<32x128xf32, #tpu.memory_space<vmem>>, %arg8: memref<1x128xf32, #tpu.memory_space<vmem>>, %arg9: memref<16x128xf32, #tpu.memory_space<vmem>>, %arg10: memref<8x16x128xf32, #tpu.memory_space<vmem>>, %arg11: memref<16x32xf32, #tpu.memory_space<vmem>>, %arg12: memref<16x32xf32, #tpu.memory_space<vmem>>, %arg13: memref<16x32xf32, #tpu.memory_space<vmem>>) attributes {dimension_semantics = [#tpu.dimension_semantics<parallel>, #tpu.dimension_semantics<arbitrary>], iteration_bounds = array<i64: 2, 2>, scalar_prefetch = 0 : i64, scratch_operands = 4 : i64, tpu.core_type = #tpu.core_type<tc>, window_params = [{transform_indices = @transform_0, window_bounds = array<i64: 8, 16, 32>}, {transform_indices = @transform_1, window_bounds = array<i64: 16, 1>}, {pipeline_mode = #tpu.pipeline_mode<synchronous>, transform_indices = @transform_2, window_bounds = array<i64: 32, 128>}, {pipeline_mode = #tpu.pipeline_mode<synchronous>, transform_indices = @transform_3, window_bounds = array<i64: 32, 128>}, {pipeline_mode = #tpu.pipeline_mode<synchronous>, transform_indices = @transform_4, window_bounds = array<i64: 1, 128>}, {pipeline_mode = #tpu.pipeline_mode<synchronous>, transform_indices = @transform_5, window_bounds = array<i64: 32, 128>}, {pipeline_mode = #tpu.pipeline_mode<synchronous>, transform_indices = @transform_6, window_bounds = array<i64: 1, 128>}, {transform_indices = @transform_7, window_bounds = array<i64: 16, 128>}]} {
    %c0_i32 = arith.constant 0 : i32
    %0 = arith.cmpi eq, %arg1, %c0_i32 : i32
    %1 = arith.extui %0 : i1 to i32
    %c0_i32_0 = arith.constant 0 : i32
    %2 = arith.cmpi ne, %1, %c0_i32_0 : i32
    scf.if %2 {
      %cst_112 = arith.constant 0.000000e+00 : f32
      %291 = vector.broadcast %cst_112 : f32 to vector<16x32xf32>
      %c0_113 = arith.constant 0 : index
      %c0_114 = arith.constant 0 : index
      %292 = vector.load %arg11[%c0_113, %c0_114] : memref<16x32xf32, #tpu.memory_space<vmem>>, vector<16x32xf32>
      tpu.vector_store %arg11[%c0_113, %c0_114], %291 {strides = array<i32>} : memref<16x32xf32, #tpu.memory_space<vmem>>, vector<16x32xf32>,
      %cst_115 = arith.constant 0.000000e+00 : f32
      %293 = vector.broadcast %cst_115 : f32 to vector<16x32xf32>
      %c0_116 = arith.constant 0 : index
      %c0_117 = arith.constant 0 : index
      %294 = vector.load %arg12[%c0_116, %c0_117] : memref<16x32xf32, #tpu.memory_space<vmem>>, vector<16x32xf32>
      tpu.vector_store %arg12[%c0_116, %c0_117], %293 {strides = array<i32>} : memref<16x32xf32, #tpu.memory_space<vmem>>, vector<16x32xf32>,
      %cst_118 = arith.constant 0.000000e+00 : f32
      %295 = vector.broadcast %cst_118 : f32 to vector<16x32xf32>
      %c0_119 = arith.constant 0 : index
      %c0_120 = arith.constant 0 : index
      %296 = vector.load %arg13[%c0_119, %c0_120] : memref<16x32xf32, #tpu.memory_space<vmem>>, vector<16x32xf32>
      tpu.vector_store %arg13[%c0_119, %c0_120], %295 {strides = array<i32>} : memref<16x32xf32, #tpu.memory_space<vmem>>, vector<16x32xf32>,
    } else {
    }
    %c0 = arith.constant 0 : index
    %c0_1 = arith.constant 0 : index
    %3 = vector.load %arg4[%c0, %c0_1] : memref<32x128xbf16, #tpu.memory_space<vmem>>, vector<32x128xbf16>
    %c0_2 = arith.constant 0 : index
    %c0_3 = arith.constant 0 : index
    %4 = vector.load %arg6[%c0_2, %c0_3] : memref<1x128xf32, #tpu.memory_space<vmem>>, vector<1x128xf32>
    %c0_4 = arith.constant 0 : index
    %c0_5 = arith.constant 0 : index
    %c0_6 = arith.constant 0 : index
    %5 = vector.load %arg2[%c0_4, %c0_5, %c0_6] : memref<8x16x32xbf16, #tpu.memory_space<vmem>>, vector<1x16x32xbf16>
    %6 = vector.shape_cast %5 : vector<1x16x32xbf16> to vector<16x32xbf16>
    %cst = arith.constant dense<0.000000e+00> : vector<16x128xf32>
    %7 = tpu.matmul %6, %3, %cst {dimension_numbers = #tpu.dot_dimension_numbers<[1], [0], [0], [1], [0, 0, 1, 1], [], []>} : vector<16x32xbf16>, vector<32x128xbf16>, vector<16x128xf32> -> vector<16x128xf32>
    %8 = vector.broadcast %4 : vector<1x128xf32> to vector<16x128xf32>
    %9 = arith.addf %7, %8 : vector<16x128xf32>
    %c0_7 = arith.constant 0 : index
    %c0_8 = arith.constant 0 : index
    %c0_9 = arith.constant 0 : index
    %10 = vector.load %arg10[%c0_7, %c0_8, %c0_9] : memref<8x16x128xf32, #tpu.memory_space<vmem>>, vector<1x16x128xf32>
    %11 = vector.shape_cast %10 : vector<1x16x128xf32> to vector<16x128xf32>
    %12 = vector.shape_cast %9 : vector<16x128xf32> to vector<1x16x128xf32>
    tpu.vector_store %arg10[%c0_7, %c0_8, %c0_9], %12 {strides = array<i32>} : memref<8x16x128xf32, #tpu.memory_space<vmem>>, vector<1x16x128xf32>,
    %c1 = arith.constant 1 : index
    %c0_10 = arith.constant 0 : index
    %c0_11 = arith.constant 0 : index
    %13 = vector.load %arg2[%c1, %c0_10, %c0_11] : memref<8x16x32xbf16, #tpu.memory_space<vmem>>, vector<1x16x32xbf16>
    %14 = vector.shape_cast %13 : vector<1x16x32xbf16> to vector<16x32xbf16>
    %cst_12 = arith.constant dense<0.000000e+00> : vector<16x128xf32>
    %15 = tpu.matmul %14, %3, %cst_12 {dimension_numbers = #tpu.dot_dimension_numbers<[1], [0], [0], [1], [0, 0, 1, 1], [], []>} : vector<16x32xbf16>, vector<32x128xbf16>, vector<16x128xf32> -> vector<16x128xf32>
    %16 = vector.broadcast %4 : vector<1x128xf32> to vector<16x128xf32>
    %17 = arith.addf %15, %16 : vector<16x128xf32>
    %c1_13 = arith.constant 1 : index
    %c0_14 = arith.constant 0 : index
    %c0_15 = arith.constant 0 : index
    %18 = vector.load %arg10[%c1_13, %c0_14, %c0_15] : memref<8x16x128xf32, #tpu.memory_space<vmem>>, vector<1x16x128xf32>
    %19 = vector.shape_cast %18 : vector<1x16x128xf32> to vector<16x128xf32>
    %20 = vector.shape_cast %17 : vector<16x128xf32> to vector<1x16x128xf32>
    tpu.vector_store %arg10[%c1_13, %c0_14, %c0_15], %20 {strides = array<i32>} : memref<8x16x128xf32, #tpu.memory_space<vmem>>, vector<1x16x128xf32>,
    %c2 = arith.constant 2 : index
    %c0_16 = arith.constant 0 : index
    %c0_17 = arith.constant 0 : index
    %21 = vector.load %arg2[%c2, %c0_16, %c0_17] : memref<8x16x32xbf16, #tpu.memory_space<vmem>>, vector<1x16x32xbf16>
    %22 = vector.shape_cast %21 : vector<1x16x32xbf16> to vector<16x32xbf16>
    %cst_18 = arith.constant dense<0.000000e+00> : vector<16x128xf32>
    %23 = tpu.matmul %22, %3, %cst_18 {dimension_numbers = #tpu.dot_dimension_numbers<[1], [0], [0], [1], [0, 0, 1, 1], [], []>} : vector<16x32xbf16>, vector<32x128xbf16>, vector<16x128xf32> -> vector<16x128xf32>
    %24 = vector.broadcast %4 : vector<1x128xf32> to vector<16x128xf32>
    %25 = arith.addf %23, %24 : vector<16x128xf32>
    %c2_19 = arith.constant 2 : index
    %c0_20 = arith.constant 0 : index
    %c0_21 = arith.constant 0 : index
    %26 = vector.load %arg10[%c2_19, %c0_20, %c0_21] : memref<8x16x128xf32, #tpu.memory_space<vmem>>, vector<1x16x128xf32>
    %27 = vector.shape_cast %26 : vector<1x16x128xf32> to vector<16x128xf32>
    %28 = vector.shape_cast %25 : vector<16x128xf32> to vector<1x16x128xf32>
    tpu.vector_store %arg10[%c2_19, %c0_20, %c0_21], %28 {strides = array<i32>} : memref<8x16x128xf32, #tpu.memory_space<vmem>>, vector<1x16x128xf32>,
    %c3 = arith.constant 3 : index
    %c0_22 = arith.constant 0 : index
    %c0_23 = arith.constant 0 : index
    %29 = vector.load %arg2[%c3, %c0_22, %c0_23] : memref<8x16x32xbf16, #tpu.memory_space<vmem>>, vector<1x16x32xbf16>
    %30 = vector.shape_cast %29 : vector<1x16x32xbf16> to vector<16x32xbf16>
    %cst_24 = arith.constant dense<0.000000e+00> : vector<16x128xf32>
    %31 = tpu.matmul %30, %3, %cst_24 {dimension_numbers = #tpu.dot_dimension_numbers<[1], [0], [0], [1], [0, 0, 1, 1], [], []>} : vector<16x32xbf16>, vector<32x128xbf16>, vector<16x128xf32> -> vector<16x128xf32>
    %32 = vector.broadcast %4 : vector<1x128xf32> to vector<16x128xf32>
    %33 = arith.addf %31, %32 : vector<16x128xf32>
    %c3_25 = arith.constant 3 : index
    %c0_26 = arith.constant 0 : index
    %c0_27 = arith.constant 0 : index
    %34 = vector.load %arg10[%c3_25, %c0_26, %c0_27] : memref<8x16x128xf32, #tpu.memory_space<vmem>>, vector<1x16x128xf32>
    %35 = vector.shape_cast %34 : vector<1x16x128xf32> to vector<16x128xf32>
    %36 = vector.shape_cast %33 : vector<16x128xf32> to vector<1x16x128xf32>
    tpu.vector_store %arg10[%c3_25, %c0_26, %c0_27], %36 {strides = array<i32>} : memref<8x16x128xf32, #tpu.memory_space<vmem>>, vector<1x16x128xf32>,
    %c4 = arith.constant 4 : index
    %c0_28 = arith.constant 0 : index
    %c0_29 = arith.constant 0 : index
    %37 = vector.load %arg2[%c4, %c0_28, %c0_29] : memref<8x16x32xbf16, #tpu.memory_space<vmem>>, vector<1x16x32xbf16>
    %38 = vector.shape_cast %37 : vector<1x16x32xbf16> to vector<16x32xbf16>
    %cst_30 = arith.constant dense<0.000000e+00> : vector<16x128xf32>
    %39 = tpu.matmul %38, %3, %cst_30 {dimension_numbers = #tpu.dot_dimension_numbers<[1], [0], [0], [1], [0, 0, 1, 1], [], []>} : vector<16x32xbf16>, vector<32x128xbf16>, vector<16x128xf32> -> vector<16x128xf32>
    %40 = vector.broadcast %4 : vector<1x128xf32> to vector<16x128xf32>
    %41 = arith.addf %39, %40 : vector<16x128xf32>
    %c4_31 = arith.constant 4 : index
    %c0_32 = arith.constant 0 : index
    %c0_33 = arith.constant 0 : index
    %42 = vector.load %arg10[%c4_31, %c0_32, %c0_33] : memref<8x16x128xf32, #tpu.memory_space<vmem>>, vector<1x16x128xf32>
    %43 = vector.shape_cast %42 : vector<1x16x128xf32> to vector<16x128xf32>
    %44 = vector.shape_cast %41 : vector<16x128xf32> to vector<1x16x128xf32>
    tpu.vector_store %arg10[%c4_31, %c0_32, %c0_33], %44 {strides = array<i32>} : memref<8x16x128xf32, #tpu.memory_space<vmem>>, vector<1x16x128xf32>,
    %c5 = arith.constant 5 : index
    %c0_34 = arith.constant 0 : index
    %c0_35 = arith.constant 0 : index
    %45 = vector.load %arg2[%c5, %c0_34, %c0_35] : memref<8x16x32xbf16, #tpu.memory_space<vmem>>, vector<1x16x32xbf16>
    %46 = vector.shape_cast %45 : vector<1x16x32xbf16> to vector<16x32xbf16>
    %cst_36 = arith.constant dense<0.000000e+00> : vector<16x128xf32>
    %47 = tpu.matmul %46, %3, %cst_36 {dimension_numbers = #tpu.dot_dimension_numbers<[1], [0], [0], [1], [0, 0, 1, 1], [], []>} : vector<16x32xbf16>, vector<32x128xbf16>, vector<16x128xf32> -> vector<16x128xf32>
    %48 = vector.broadcast %4 : vector<1x128xf32> to vector<16x128xf32>
    %49 = arith.addf %47, %48 : vector<16x128xf32>
    %c5_37 = arith.constant 5 : index
    %c0_38 = arith.constant 0 : index
    %c0_39 = arith.constant 0 : index
    %50 = vector.load %arg10[%c5_37, %c0_38, %c0_39] : memref<8x16x128xf32, #tpu.memory_space<vmem>>, vector<1x16x128xf32>
    %51 = vector.shape_cast %50 : vector<1x16x128xf32> to vector<16x128xf32>
    %52 = vector.shape_cast %49 : vector<16x128xf32> to vector<1x16x128xf32>
    tpu.vector_store %arg10[%c5_37, %c0_38, %c0_39], %52 {strides = array<i32>} : memref<8x16x128xf32, #tpu.memory_space<vmem>>, vector<1x16x128xf32>,
    %c6 = arith.constant 6 : index
    %c0_40 = arith.constant 0 : index
    %c0_41 = arith.constant 0 : index
    %53 = vector.load %arg2[%c6, %c0_40, %c0_41] : memref<8x16x32xbf16, #tpu.memory_space<vmem>>, vector<1x16x32xbf16>
    %54 = vector.shape_cast %53 : vector<1x16x32xbf16> to vector<16x32xbf16>
    %cst_42 = arith.constant dense<0.000000e+00> : vector<16x128xf32>
    %55 = tpu.matmul %54, %3, %cst_42 {dimension_numbers = #tpu.dot_dimension_numbers<[1], [0], [0], [1], [0, 0, 1, 1], [], []>} : vector<16x32xbf16>, vector<32x128xbf16>, vector<16x128xf32> -> vector<16x128xf32>
    %56 = vector.broadcast %4 : vector<1x128xf32> to vector<16x128xf32>
    %57 = arith.addf %55, %56 : vector<16x128xf32>
    %c6_43 = arith.constant 6 : index
    %c0_44 = arith.constant 0 : index
    %c0_45 = arith.constant 0 : index
    %58 = vector.load %arg10[%c6_43, %c0_44, %c0_45] : memref<8x16x128xf32, #tpu.memory_space<vmem>>, vector<1x16x128xf32>
    %59 = vector.shape_cast %58 : vector<1x16x128xf32> to vector<16x128xf32>
    %60 = vector.shape_cast %57 : vector<16x128xf32> to vector<1x16x128xf32>
    tpu.vector_store %arg10[%c6_43, %c0_44, %c0_45], %60 {strides = array<i32>} : memref<8x16x128xf32, #tpu.memory_space<vmem>>, vector<1x16x128xf32>,
    %c7 = arith.constant 7 : index
    %c0_46 = arith.constant 0 : index
    %c0_47 = arith.constant 0 : index
    %61 = vector.load %arg2[%c7, %c0_46, %c0_47] : memref<8x16x32xbf16, #tpu.memory_space<vmem>>, vector<1x16x32xbf16>
    %62 = vector.shape_cast %61 : vector<1x16x32xbf16> to vector<16x32xbf16>
    %cst_48 = arith.constant dense<0.000000e+00> : vector<16x128xf32>
    %63 = tpu.matmul %62, %3, %cst_48 {dimension_numbers = #tpu.dot_dimension_numbers<[1], [0], [0], [1], [0, 0, 1, 1], [], []>} : vector<16x32xbf16>, vector<32x128xbf16>, vector<16x128xf32> -> vector<16x128xf32>
    %64 = vector.broadcast %4 : vector<1x128xf32> to vector<16x128xf32>
    %65 = arith.addf %63, %64 : vector<16x128xf32>
    %c7_49 = arith.constant 7 : index
    %c0_50 = arith.constant 0 : index
    %c0_51 = arith.constant 0 : index
    %66 = vector.load %arg10[%c7_49, %c0_50, %c0_51] : memref<8x16x128xf32, #tpu.memory_space<vmem>>, vector<1x16x128xf32>
    %67 = vector.shape_cast %66 : vector<1x16x128xf32> to vector<16x128xf32>
    %68 = vector.shape_cast %65 : vector<16x128xf32> to vector<1x16x128xf32>
    tpu.vector_store %arg10[%c7_49, %c0_50, %c0_51], %68 {strides = array<i32>} : memref<8x16x128xf32, #tpu.memory_space<vmem>>, vector<1x16x128xf32>,
    %c0_52 = arith.constant 0 : index
    %c0_53 = arith.constant 0 : index
    %69 = vector.load %arg5[%c0_52, %c0_53] : memref<32x128xbf16, #tpu.memory_space<vmem>>, vector<32x128xbf16>
    %c0_54 = arith.constant 0 : index
    %c0_55 = arith.constant 0 : index
    %70 = vector.load %arg3[%c0_54, %c0_55] : memref<16x1xi32, #tpu.memory_space<vmem>>, vector<16x1xi32>
    %71 = vector.shape_cast %70 : vector<16x1xi32> to vector<16x1xi32>
    %72 = vector.broadcast %71 : vector<16x1xi32> to vector<16x32xi32>
    %c8_i32 = arith.constant 8 : i32
    %73 = arith.muli %arg1, %c8_i32 : i32
    %c0_56 = arith.constant 0 : index
    %c0_57 = arith.constant 0 : index
    %74 = vector.load %arg11[%c0_56, %c0_57] : memref<16x32xf32, #tpu.memory_space<vmem>>, vector<16x32xf32>
    %c0_58 = arith.constant 0 : index
    %c0_59 = arith.constant 0 : index
    %75 = vector.load %arg12[%c0_58, %c0_59] : memref<16x32xf32, #tpu.memory_space<vmem>>, vector<16x32xf32>
    %c0_60 = arith.constant 0 : index
    %c0_61 = arith.constant 0 : index
    %76 = vector.load %arg13[%c0_60, %c0_61] : memref<16x32xf32, #tpu.memory_space<vmem>>, vector<16x32xf32>
    %c0_i32_62 = arith.constant 0 : i32
    %77 = arith.index_cast %c0_i32_62 : i32 to index
    %c0_63 = arith.constant 0 : index
    %c0_64 = arith.constant 0 : index
    %78 = vector.load %arg10[%77, %c0_63, %c0_64] : memref<8x16x128xf32, #tpu.memory_space<vmem>>, vector<1x16x128xf32>
    %79 = vector.shape_cast %78 : vector<1x16x128xf32> to vector<16x128xf32>
    %80 = arith.truncf %74 : vector<16x32xf32> to vector<16x32xbf16>
    %cst_65 = arith.constant dense<0.000000e+00> : vector<16x128xf32>
    %81 = tpu.matmul %80, %69, %cst_65 {dimension_numbers = #tpu.dot_dimension_numbers<[1], [0], [0], [1], [0, 0, 1, 1], [], []>} : vector<16x32xbf16>, vector<32x128xbf16>, vector<16x128xf32> -> vector<16x128xf32>
    %82 = arith.addf %79, %81 : vector<16x128xf32>
    %83 = arith.negf %82 : vector<16x128xf32>
    %84 = math.exp %83 : vector<16x128xf32>
    %cst_66 = arith.constant 1.000000e+00 : f32
    %85 = vector.broadcast %cst_66 : f32 to vector<16x128xf32>
    %86 = arith.addf %85, %84 : vector<16x128xf32>
    %87 = arith.divf %85, %86 : vector<16x128xf32>
    %88 = math.tanh %82 : vector<16x128xf32>
    %89 = vector.extract_strided_slice %87 {offsets = [0, 0], sizes = [16, 32], strides = [1, 1]} : vector<16x128xf32> to vector<16x32xf32>
    %90 = vector.extract_strided_slice %87 {offsets = [0, 32], sizes = [16, 32], strides = [1, 1]} : vector<16x128xf32> to vector<16x32xf32>
    %91 = vector.extract_strided_slice %88 {offsets = [0, 64], sizes = [16, 32], strides = [1, 1]} : vector<16x128xf32> to vector<16x32xf32>
    %92 = vector.extract_strided_slice %87 {offsets = [0, 96], sizes = [16, 32], strides = [1, 1]} : vector<16x128xf32> to vector<16x32xf32>
    %93 = arith.mulf %90, %75 : vector<16x32xf32>
    %94 = arith.mulf %89, %91 : vector<16x32xf32>
    %95 = arith.addf %93, %94 : vector<16x32xf32>
    %96 = math.tanh %95 : vector<16x32xf32>
    %97 = arith.mulf %92, %96 : vector<16x32xf32>
    %98 = arith.addi %73, %c0_i32_62 : i32
    %c1_i32 = arith.constant 1 : i32
    %99 = arith.addi %98, %c1_i32 : i32
    %100 = vector.broadcast %99 : i32 to vector<16x32xi32>
    %101 = arith.cmpi eq, %72, %100 : vector<16x32xi32>
    %102 = arith.select %101, %97, %76 : vector<16x32xi1>, vector<16x32xf32>
    %c1_i32_67 = arith.constant 1 : i32
    %103 = arith.index_cast %c1_i32_67 : i32 to index
    %c0_68 = arith.constant 0 : index
    %c0_69 = arith.constant 0 : index
    %104 = vector.load %arg10[%103, %c0_68, %c0_69] : memref<8x16x128xf32, #tpu.memory_space<vmem>>, vector<1x16x128xf32>
    %105 = vector.shape_cast %104 : vector<1x16x128xf32> to vector<16x128xf32>
    %106 = arith.truncf %97 : vector<16x32xf32> to vector<16x32xbf16>
    %cst_70 = arith.constant dense<0.000000e+00> : vector<16x128xf32>
    %107 = tpu.matmul %106, %69, %cst_70 {dimension_numbers = #tpu.dot_dimension_numbers<[1], [0], [0], [1], [0, 0, 1, 1], [], []>} : vector<16x32xbf16>, vector<32x128xbf16>, vector<16x128xf32> -> vector<16x128xf32>
    %108 = arith.addf %105, %107 : vector<16x128xf32>
    %109 = arith.negf %108 : vector<16x128xf32>
    %110 = math.exp %109 : vector<16x128xf32>
    %cst_71 = arith.constant 1.000000e+00 : f32
    %111 = vector.broadcast %cst_71 : f32 to vector<16x128xf32>
    %112 = arith.addf %111, %110 : vector<16x128xf32>
    %113 = arith.divf %111, %112 : vector<16x128xf32>
    %114 = math.tanh %108 : vector<16x128xf32>
    %115 = vector.extract_strided_slice %113 {offsets = [0, 0], sizes = [16, 32], strides = [1, 1]} : vector<16x128xf32> to vector<16x32xf32>
    %116 = vector.extract_strided_slice %113 {offsets = [0, 32], sizes = [16, 32], strides = [1, 1]} : vector<16x128xf32> to vector<16x32xf32>
    %117 = vector.extract_strided_slice %114 {offsets = [0, 64], sizes = [16, 32], strides = [1, 1]} : vector<16x128xf32> to vector<16x32xf32>
    %118 = vector.extract_strided_slice %113 {offsets = [0, 96], sizes = [16, 32], strides = [1, 1]} : vector<16x128xf32> to vector<16x32xf32>
    %119 = arith.mulf %116, %95 : vector<16x32xf32>
    %120 = arith.mulf %115, %117 : vector<16x32xf32>
    %121 = arith.addf %119, %120 : vector<16x32xf32>
    %122 = math.tanh %121 : vector<16x32xf32>
    %123 = arith.mulf %118, %122 : vector<16x32xf32>
    %124 = arith.addi %73, %c1_i32_67 : i32
    %c1_i32_72 = arith.constant 1 : i32
    %125 = arith.addi %124, %c1_i32_72 : i32
    %126 = vector.broadcast %125 : i32 to vector<16x32xi32>
    %127 = arith.cmpi eq, %72, %126 : vector<16x32xi32>
    %128 = arith.select %127, %123, %102 : vector<16x32xi1>, vector<16x32xf32>
    %c2_i32 = arith.constant 2 : i32
    %129 = arith.index_cast %c2_i32 : i32 to index
    %c0_73 = arith.constant 0 : index
    %c0_74 = arith.constant 0 : index
    %130 = vector.load %arg10[%129, %c0_73, %c0_74] : memref<8x16x128xf32, #tpu.memory_space<vmem>>, vector<1x16x128xf32>
    %131 = vector.shape_cast %130 : vector<1x16x128xf32> to vector<16x128xf32>
    %132 = arith.truncf %123 : vector<16x32xf32> to vector<16x32xbf16>
    %cst_75 = arith.constant dense<0.000000e+00> : vector<16x128xf32>
    %133 = tpu.matmul %132, %69, %cst_75 {dimension_numbers = #tpu.dot_dimension_numbers<[1], [0], [0], [1], [0, 0, 1, 1], [], []>} : vector<16x32xbf16>, vector<32x128xbf16>, vector<16x128xf32> -> vector<16x128xf32>
    %134 = arith.addf %131, %133 : vector<16x128xf32>
    %135 = arith.negf %134 : vector<16x128xf32>
    %136 = math.exp %135 : vector<16x128xf32>
    %cst_76 = arith.constant 1.000000e+00 : f32
    %137 = vector.broadcast %cst_76 : f32 to vector<16x128xf32>
    %138 = arith.addf %137, %136 : vector<16x128xf32>
    %139 = arith.divf %137, %138 : vector<16x128xf32>
    %140 = math.tanh %134 : vector<16x128xf32>
    %141 = vector.extract_strided_slice %139 {offsets = [0, 0], sizes = [16, 32], strides = [1, 1]} : vector<16x128xf32> to vector<16x32xf32>
    %142 = vector.extract_strided_slice %139 {offsets = [0, 32], sizes = [16, 32], strides = [1, 1]} : vector<16x128xf32> to vector<16x32xf32>
    %143 = vector.extract_strided_slice %140 {offsets = [0, 64], sizes = [16, 32], strides = [1, 1]} : vector<16x128xf32> to vector<16x32xf32>
    %144 = vector.extract_strided_slice %139 {offsets = [0, 96], sizes = [16, 32], strides = [1, 1]} : vector<16x128xf32> to vector<16x32xf32>
    %145 = arith.mulf %142, %121 : vector<16x32xf32>
    %146 = arith.mulf %141, %143 : vector<16x32xf32>
    %147 = arith.addf %145, %146 : vector<16x32xf32>
    %148 = math.tanh %147 : vector<16x32xf32>
    %149 = arith.mulf %144, %148 : vector<16x32xf32>
    %150 = arith.addi %73, %c2_i32 : i32
    %c1_i32_77 = arith.constant 1 : i32
    %151 = arith.addi %150, %c1_i32_77 : i32
    %152 = vector.broadcast %151 : i32 to vector<16x32xi32>
    %153 = arith.cmpi eq, %72, %152 : vector<16x32xi32>
    %154 = arith.select %153, %149, %128 : vector<16x32xi1>, vector<16x32xf32>
    %c3_i32 = arith.constant 3 : i32
    %155 = arith.index_cast %c3_i32 : i32 to index
    %c0_78 = arith.constant 0 : index
    %c0_79 = arith.constant 0 : index
    %156 = vector.load %arg10[%155, %c0_78, %c0_79] : memref<8x16x128xf32, #tpu.memory_space<vmem>>, vector<1x16x128xf32>
    %157 = vector.shape_cast %156 : vector<1x16x128xf32> to vector<16x128xf32>
    %158 = arith.truncf %149 : vector<16x32xf32> to vector<16x32xbf16>
    %cst_80 = arith.constant dense<0.000000e+00> : vector<16x128xf32>
    %159 = tpu.matmul %158, %69, %cst_80 {dimension_numbers = #tpu.dot_dimension_numbers<[1], [0], [0], [1], [0, 0, 1, 1], [], []>} : vector<16x32xbf16>, vector<32x128xbf16>, vector<16x128xf32> -> vector<16x128xf32>
    %160 = arith.addf %157, %159 : vector<16x128xf32>
    %161 = arith.negf %160 : vector<16x128xf32>
    %162 = math.exp %161 : vector<16x128xf32>
    %cst_81 = arith.constant 1.000000e+00 : f32
    %163 = vector.broadcast %cst_81 : f32 to vector<16x128xf32>
    %164 = arith.addf %163, %162 : vector<16x128xf32>
    %165 = arith.divf %163, %164 : vector<16x128xf32>
    %166 = math.tanh %160 : vector<16x128xf32>
    %167 = vector.extract_strided_slice %165 {offsets = [0, 0], sizes = [16, 32], strides = [1, 1]} : vector<16x128xf32> to vector<16x32xf32>
    %168 = vector.extract_strided_slice %165 {offsets = [0, 32], sizes = [16, 32], strides = [1, 1]} : vector<16x128xf32> to vector<16x32xf32>
    %169 = vector.extract_strided_slice %166 {offsets = [0, 64], sizes = [16, 32], strides = [1, 1]} : vector<16x128xf32> to vector<16x32xf32>
    %170 = vector.extract_strided_slice %165 {offsets = [0, 96], sizes = [16, 32], strides = [1, 1]} : vector<16x128xf32> to vector<16x32xf32>
    %171 = arith.mulf %168, %147 : vector<16x32xf32>
    %172 = arith.mulf %167, %169 : vector<16x32xf32>
    %173 = arith.addf %171, %172 : vector<16x32xf32>
    %174 = math.tanh %173 : vector<16x32xf32>
    %175 = arith.mulf %170, %174 : vector<16x32xf32>
    %176 = arith.addi %73, %c3_i32 : i32
    %c1_i32_82 = arith.constant 1 : i32
    %177 = arith.addi %176, %c1_i32_82 : i32
    %178 = vector.broadcast %177 : i32 to vector<16x32xi32>
    %179 = arith.cmpi eq, %72, %178 : vector<16x32xi32>
    %180 = arith.select %179, %175, %154 : vector<16x32xi1>, vector<16x32xf32>
    %c4_i32 = arith.constant 4 : i32
    %181 = arith.index_cast %c4_i32 : i32 to index
    %c0_83 = arith.constant 0 : index
    %c0_84 = arith.constant 0 : index
    %182 = vector.load %arg10[%181, %c0_83, %c0_84] : memref<8x16x128xf32, #tpu.memory_space<vmem>>, vector<1x16x128xf32>
    %183 = vector.shape_cast %182 : vector<1x16x128xf32> to vector<16x128xf32>
    %184 = arith.truncf %175 : vector<16x32xf32> to vector<16x32xbf16>
    %cst_85 = arith.constant dense<0.000000e+00> : vector<16x128xf32>
    %185 = tpu.matmul %184, %69, %cst_85 {dimension_numbers = #tpu.dot_dimension_numbers<[1], [0], [0], [1], [0, 0, 1, 1], [], []>} : vector<16x32xbf16>, vector<32x128xbf16>, vector<16x128xf32> -> vector<16x128xf32>
    %186 = arith.addf %183, %185 : vector<16x128xf32>
    %187 = arith.negf %186 : vector<16x128xf32>
    %188 = math.exp %187 : vector<16x128xf32>
    %cst_86 = arith.constant 1.000000e+00 : f32
    %189 = vector.broadcast %cst_86 : f32 to vector<16x128xf32>
    %190 = arith.addf %189, %188 : vector<16x128xf32>
    %191 = arith.divf %189, %190 : vector<16x128xf32>
    %192 = math.tanh %186 : vector<16x128xf32>
    %193 = vector.extract_strided_slice %191 {offsets = [0, 0], sizes = [16, 32], strides = [1, 1]} : vector<16x128xf32> to vector<16x32xf32>
    %194 = vector.extract_strided_slice %191 {offsets = [0, 32], sizes = [16, 32], strides = [1, 1]} : vector<16x128xf32> to vector<16x32xf32>
    %195 = vector.extract_strided_slice %192 {offsets = [0, 64], sizes = [16, 32], strides = [1, 1]} : vector<16x128xf32> to vector<16x32xf32>
    %196 = vector.extract_strided_slice %191 {offsets = [0, 96], sizes = [16, 32], strides = [1, 1]} : vector<16x128xf32> to vector<16x32xf32>
    %197 = arith.mulf %194, %173 : vector<16x32xf32>
    %198 = arith.mulf %193, %195 : vector<16x32xf32>
    %199 = arith.addf %197, %198 : vector<16x32xf32>
    %200 = math.tanh %199 : vector<16x32xf32>
    %201 = arith.mulf %196, %200 : vector<16x32xf32>
    %202 = arith.addi %73, %c4_i32 : i32
    %c1_i32_87 = arith.constant 1 : i32
    %203 = arith.addi %202, %c1_i32_87 : i32
    %204 = vector.broadcast %203 : i32 to vector<16x32xi32>
    %205 = arith.cmpi eq, %72, %204 : vector<16x32xi32>
    %206 = arith.select %205, %201, %180 : vector<16x32xi1>, vector<16x32xf32>
    %c5_i32 = arith.constant 5 : i32
    %207 = arith.index_cast %c5_i32 : i32 to index
    %c0_88 = arith.constant 0 : index
    %c0_89 = arith.constant 0 : index
    %208 = vector.load %arg10[%207, %c0_88, %c0_89] : memref<8x16x128xf32, #tpu.memory_space<vmem>>, vector<1x16x128xf32>
    %209 = vector.shape_cast %208 : vector<1x16x128xf32> to vector<16x128xf32>
    %210 = arith.truncf %201 : vector<16x32xf32> to vector<16x32xbf16>
    %cst_90 = arith.constant dense<0.000000e+00> : vector<16x128xf32>
    %211 = tpu.matmul %210, %69, %cst_90 {dimension_numbers = #tpu.dot_dimension_numbers<[1], [0], [0], [1], [0, 0, 1, 1], [], []>} : vector<16x32xbf16>, vector<32x128xbf16>, vector<16x128xf32> -> vector<16x128xf32>
    %212 = arith.addf %209, %211 : vector<16x128xf32>
    %213 = arith.negf %212 : vector<16x128xf32>
    %214 = math.exp %213 : vector<16x128xf32>
    %cst_91 = arith.constant 1.000000e+00 : f32
    %215 = vector.broadcast %cst_91 : f32 to vector<16x128xf32>
    %216 = arith.addf %215, %214 : vector<16x128xf32>
    %217 = arith.divf %215, %216 : vector<16x128xf32>
    %218 = math.tanh %212 : vector<16x128xf32>
    %219 = vector.extract_strided_slice %217 {offsets = [0, 0], sizes = [16, 32], strides = [1, 1]} : vector<16x128xf32> to vector<16x32xf32>
    %220 = vector.extract_strided_slice %217 {offsets = [0, 32], sizes = [16, 32], strides = [1, 1]} : vector<16x128xf32> to vector<16x32xf32>
    %221 = vector.extract_strided_slice %218 {offsets = [0, 64], sizes = [16, 32], strides = [1, 1]} : vector<16x128xf32> to vector<16x32xf32>
    %222 = vector.extract_strided_slice %217 {offsets = [0, 96], sizes = [16, 32], strides = [1, 1]} : vector<16x128xf32> to vector<16x32xf32>
    %223 = arith.mulf %220, %199 : vector<16x32xf32>
    %224 = arith.mulf %219, %221 : vector<16x32xf32>
    %225 = arith.addf %223, %224 : vector<16x32xf32>
    %226 = math.tanh %225 : vector<16x32xf32>
    %227 = arith.mulf %222, %226 : vector<16x32xf32>
    %228 = arith.addi %73, %c5_i32 : i32
    %c1_i32_92 = arith.constant 1 : i32
    %229 = arith.addi %228, %c1_i32_92 : i32
    %230 = vector.broadcast %229 : i32 to vector<16x32xi32>
    %231 = arith.cmpi eq, %72, %230 : vector<16x32xi32>
    %232 = arith.select %231, %227, %206 : vector<16x32xi1>, vector<16x32xf32>
    %c6_i32 = arith.constant 6 : i32
    %233 = arith.index_cast %c6_i32 : i32 to index
    %c0_93 = arith.constant 0 : index
    %c0_94 = arith.constant 0 : index
    %234 = vector.load %arg10[%233, %c0_93, %c0_94] : memref<8x16x128xf32, #tpu.memory_space<vmem>>, vector<1x16x128xf32>
    %235 = vector.shape_cast %234 : vector<1x16x128xf32> to vector<16x128xf32>
    %236 = arith.truncf %227 : vector<16x32xf32> to vector<16x32xbf16>
    %cst_95 = arith.constant dense<0.000000e+00> : vector<16x128xf32>
    %237 = tpu.matmul %236, %69, %cst_95 {dimension_numbers = #tpu.dot_dimension_numbers<[1], [0], [0], [1], [0, 0, 1, 1], [], []>} : vector<16x32xbf16>, vector<32x128xbf16>, vector<16x128xf32> -> vector<16x128xf32>
    %238 = arith.addf %235, %237 : vector<16x128xf32>
    %239 = arith.negf %238 : vector<16x128xf32>
    %240 = math.exp %239 : vector<16x128xf32>
    %cst_96 = arith.constant 1.000000e+00 : f32
    %241 = vector.broadcast %cst_96 : f32 to vector<16x128xf32>
    %242 = arith.addf %241, %240 : vector<16x128xf32>
    %243 = arith.divf %241, %242 : vector<16x128xf32>
    %244 = math.tanh %238 : vector<16x128xf32>
    %245 = vector.extract_strided_slice %243 {offsets = [0, 0], sizes = [16, 32], strides = [1, 1]} : vector<16x128xf32> to vector<16x32xf32>
    %246 = vector.extract_strided_slice %243 {offsets = [0, 32], sizes = [16, 32], strides = [1, 1]} : vector<16x128xf32> to vector<16x32xf32>
    %247 = vector.extract_strided_slice %244 {offsets = [0, 64], sizes = [16, 32], strides = [1, 1]} : vector<16x128xf32> to vector<16x32xf32>
    %248 = vector.extract_strided_slice %243 {offsets = [0, 96], sizes = [16, 32], strides = [1, 1]} : vector<16x128xf32> to vector<16x32xf32>
    %249 = arith.mulf %246, %225 : vector<16x32xf32>
    %250 = arith.mulf %245, %247 : vector<16x32xf32>
    %251 = arith.addf %249, %250 : vector<16x32xf32>
    %252 = math.tanh %251 : vector<16x32xf32>
    %253 = arith.mulf %248, %252 : vector<16x32xf32>
    %254 = arith.addi %73, %c6_i32 : i32
    %c1_i32_97 = arith.constant 1 : i32
    %255 = arith.addi %254, %c1_i32_97 : i32
    %256 = vector.broadcast %255 : i32 to vector<16x32xi32>
    %257 = arith.cmpi eq, %72, %256 : vector<16x32xi32>
    %258 = arith.select %257, %253, %232 : vector<16x32xi1>, vector<16x32xf32>
    %c7_i32 = arith.constant 7 : i32
    %259 = arith.index_cast %c7_i32 : i32 to index
    %c0_98 = arith.constant 0 : index
    %c0_99 = arith.constant 0 : index
    %260 = vector.load %arg10[%259, %c0_98, %c0_99] : memref<8x16x128xf32, #tpu.memory_space<vmem>>, vector<1x16x128xf32>
    %261 = vector.shape_cast %260 : vector<1x16x128xf32> to vector<16x128xf32>
    %262 = arith.truncf %253 : vector<16x32xf32> to vector<16x32xbf16>
    %cst_100 = arith.constant dense<0.000000e+00> : vector<16x128xf32>
    %263 = tpu.matmul %262, %69, %cst_100 {dimension_numbers = #tpu.dot_dimension_numbers<[1], [0], [0], [1], [0, 0, 1, 1], [], []>} : vector<16x32xbf16>, vector<32x128xbf16>, vector<16x128xf32> -> vector<16x128xf32>
    %264 = arith.addf %261, %263 : vector<16x128xf32>
    %265 = arith.negf %264 : vector<16x128xf32>
    %266 = math.exp %265 : vector<16x128xf32>
    %cst_101 = arith.constant 1.000000e+00 : f32
    %267 = vector.broadcast %cst_101 : f32 to vector<16x128xf32>
    %268 = arith.addf %267, %266 : vector<16x128xf32>
    %269 = arith.divf %267, %268 : vector<16x128xf32>
    %270 = math.tanh %264 : vector<16x128xf32>
    %271 = vector.extract_strided_slice %269 {offsets = [0, 0], sizes = [16, 32], strides = [1, 1]} : vector<16x128xf32> to vector<16x32xf32>
    %272 = vector.extract_strided_slice %269 {offsets = [0, 32], sizes = [16, 32], strides = [1, 1]} : vector<16x128xf32> to vector<16x32xf32>
    %273 = vector.extract_strided_slice %270 {offsets = [0, 64], sizes = [16, 32], strides = [1, 1]} : vector<16x128xf32> to vector<16x32xf32>
    %274 = vector.extract_strided_slice %269 {offsets = [0, 96], sizes = [16, 32], strides = [1, 1]} : vector<16x128xf32> to vector<16x32xf32>
    %275 = arith.mulf %272, %251 : vector<16x32xf32>
    %276 = arith.mulf %271, %273 : vector<16x32xf32>
    %277 = arith.addf %275, %276 : vector<16x32xf32>
    %278 = math.tanh %277 : vector<16x32xf32>
    %279 = arith.mulf %274, %278 : vector<16x32xf32>
    %280 = arith.addi %73, %c7_i32 : i32
    %c1_i32_102 = arith.constant 1 : i32
    %281 = arith.addi %280, %c1_i32_102 : i32
    %282 = vector.broadcast %281 : i32 to vector<16x32xi32>
    %283 = arith.cmpi eq, %72, %282 : vector<16x32xi32>
    %284 = arith.select %283, %279, %258 : vector<16x32xi1>, vector<16x32xf32>
    %c8_i32_103 = arith.constant 8 : i32
    %c0_104 = arith.constant 0 : index
    %c0_105 = arith.constant 0 : index
    %285 = vector.load %arg11[%c0_104, %c0_105] : memref<16x32xf32, #tpu.memory_space<vmem>>, vector<16x32xf32>
    tpu.vector_store %arg11[%c0_104, %c0_105], %279 {strides = array<i32>} : memref<16x32xf32, #tpu.memory_space<vmem>>, vector<16x32xf32>,
    %c0_106 = arith.constant 0 : index
    %c0_107 = arith.constant 0 : index
    %286 = vector.load %arg12[%c0_106, %c0_107] : memref<16x32xf32, #tpu.memory_space<vmem>>, vector<16x32xf32>
    tpu.vector_store %arg12[%c0_106, %c0_107], %277 {strides = array<i32>} : memref<16x32xf32, #tpu.memory_space<vmem>>, vector<16x32xf32>,
    %c0_108 = arith.constant 0 : index
    %c0_109 = arith.constant 0 : index
    %287 = vector.load %arg13[%c0_108, %c0_109] : memref<16x32xf32, #tpu.memory_space<vmem>>, vector<16x32xf32>
    tpu.vector_store %arg13[%c0_108, %c0_109], %284 {strides = array<i32>} : memref<16x32xf32, #tpu.memory_space<vmem>>, vector<16x32xf32>,
    %c1_i32_110 = arith.constant 1 : i32
    %288 = arith.cmpi eq, %arg1, %c1_i32_110 : i32
    %289 = arith.extui %288 : i1 to i32
    %c0_i32_111 = arith.constant 0 : i32
    %290 = arith.cmpi ne, %289, %c0_i32_111 : i32
    scf.if %290 {
      %c0_112 = arith.constant 0 : index
      %c0_113 = arith.constant 0 : index
      %291 = vector.load %arg7[%c0_112, %c0_113] : memref<32x128xf32, #tpu.memory_space<vmem>>, vector<32x128xf32>
      %cst_114 = arith.constant dense<0.000000e+00> : vector<16x128xf32>
      %292 = tpu.matmul %284, %291, %cst_114 {dimension_numbers = #tpu.dot_dimension_numbers<[1], [0], [0], [1], [0, 0, 1, 1], [], []>} : vector<16x32xf32>, vector<32x128xf32>, vector<16x128xf32> -> vector<16x128xf32>
      %c0_115 = arith.constant 0 : index
      %c0_116 = arith.constant 0 : index
      %293 = vector.load %arg8[%c0_115, %c0_116] : memref<1x128xf32, #tpu.memory_space<vmem>>, vector<1x128xf32>
      %294 = vector.broadcast %293 : vector<1x128xf32> to vector<16x128xf32>
      %295 = arith.addf %292, %294 : vector<16x128xf32>
      %c0_117 = arith.constant 0 : index
      %c0_118 = arith.constant 0 : index
      %296 = vector.load %arg9[%c0_117, %c0_118] : memref<16x128xf32, #tpu.memory_space<vmem>>, vector<16x128xf32>
      tpu.vector_store %arg9[%c0_117, %c0_118], %295 {strides = array<i32>} : memref<16x128xf32, #tpu.memory_space<vmem>>, vector<16x128xf32>,
    } else {
    }
    return
  }
  func.func @transform_0(%arg0: i32, %arg1: i32) -> (i32, i32, i32) {
    %c0_i32 = arith.constant 0 : i32
    %c0_i32_0 = arith.constant 0 : i32
    return %arg1, %arg0, %c0_i32 : i32, i32, i32
  }
  func.func @transform_1(%arg0: i32, %arg1: i32) -> (i32, i32) {
    %c0_i32 = arith.constant 0 : i32
    %c0_i32_0 = arith.constant 0 : i32
    return %arg0, %c0_i32 : i32, i32
  }
  func.func @transform_2(%arg0: i32, %arg1: i32) -> (i32, i32) {
    %c0_i32 = arith.constant 0 : i32
    %c0_i32_0 = arith.constant 0 : i32
    %c0_i32_1 = arith.constant 0 : i32
    return %c0_i32, %c0_i32_0 : i32, i32
  }
  func.func @transform_3(%arg0: i32, %arg1: i32) -> (i32, i32) {
    %c0_i32 = arith.constant 0 : i32
    %c0_i32_0 = arith.constant 0 : i32
    %c0_i32_1 = arith.constant 0 : i32
    return %c0_i32, %c0_i32_0 : i32, i32
  }
  func.func @transform_4(%arg0: i32, %arg1: i32) -> (i32, i32) {
    %c0_i32 = arith.constant 0 : i32
    %c0_i32_0 = arith.constant 0 : i32
    %c0_i32_1 = arith.constant 0 : i32
    return %c0_i32, %c0_i32_0 : i32, i32
  }
  func.func @transform_5(%arg0: i32, %arg1: i32) -> (i32, i32) {
    %c0_i32 = arith.constant 0 : i32
    %c0_i32_0 = arith.constant 0 : i32
    %c0_i32_1 = arith.constant 0 : i32
    return %c0_i32, %c0_i32_0 : i32, i32
  }
  func.func @transform_6(%arg0: i32, %arg1: i32) -> (i32, i32) {
    %c0_i32 = arith.constant 0 : i32
    %c0_i32_0 = arith.constant 0 : i32
    %c0_i32_1 = arith.constant 0 : i32
    return %c0_i32, %c0_i32_0 : i32, i32
  }
  func.func @transform_7(%arg0: i32, %arg1: i32) -> (i32, i32) {
    %c0_i32 = arith.constant 0 : i32
    %c0_i32_0 = arith.constant 0 : i32
    return %arg0, %c0_i32 : i32, i32
  }
}

</mosaic_0001>

<llo_original>
// kernel: tpu_custom_call.1
$region0: #{tpu_custom_call.1}
  #allocation0 [shape = 'u32[]', space=smem, size = 0x4, offset = 0x4, fixed_abs, tag = 'smem constant byte address 0x4 - core index']
  #allocation1 [shape = 'u32[72,128]{1,0:T(1,128)}', space=vmem, size = 0x9000, scoped, tag = 'internal scratch']
  #allocation2 [shape = 'f32[8,16,128]{2,1,0:T(8,128)}', space=vmem, size = 0x10000, scoped, tag = 'scratch operand']
  #allocation3 [shape = 'f32[16,32]{1,0:T(8,128)}', space=vmem, size = 0x2000, scoped, tag = 'scratch operand']
  #allocation4 [shape = 'f32[16,32]{1,0:T(8,128)}', space=vmem, size = 0x2000, scoped, tag = 'scratch operand']
  #allocation5 [shape = 'f32[16,32]{1,0:T(8,128)}', space=vmem, size = 0x2000, scoped, tag = 'scratch operand']
  #allocation13 [shape = 's32[]', space=sflag, size = 0x4, offset = 0, fixed_abs, tag = 'sflag constant byte address 0x0 - dummy sync flag']
  %s0 = inlined_call_operand.hbm [shape: bf16[16,32,32], index: 0, kind: input, shape index: {}]
  %s1 = inlined_call_operand.vmem [shape: s32[32,1], index: 1, kind: input, shape index: {}]
  %s2 = inlined_call_operand.hbm [shape: bf16[32,128], index: 2, kind: input, shape index: {}]
  %s3 = inlined_call_operand.hbm [shape: bf16[32,128], index: 3, kind: input, shape index: {}]
  %s4 = inlined_call_operand.vmem [shape: f32[1,128], index: 4, kind: input, shape index: {}]
  %s5 = inlined_call_operand.vmem [shape: f32[32,128], index: 5, kind: input, shape index: {}]
  %s6 = inlined_call_operand.vmem [shape: f32[1,128], index: 6, kind: input, shape index: {}]
  %s7 = inlined_call_operand.hbm [shape: f32[32,128], index: 7, kind: output, shape index: {}]
  %s8 = sld [smem:[#allocation0]]
  $region81: #{tpu_custom_call.1} parent=0
    _
  %s10 = ssub.s32 1, %s8
  %s11 = scalar_select 0, %s10, %s8
  $region1: #{tpu_custom_call.1} parent=0
    #allocation6 [shape = 'u8[65536]{0}', space=vmem, size = 0x10000, scoped, tag = 'input window, operand 0']
    #allocation7 [shape = 's32[2]{0}', space=sflag, size = 0x8, scoped, tag = 'scoped memory for tpu_custom_call.1']
    #allocation8 [shape = 's32[2]{0}', space=sflag, size = 0x8, scoped, tag = 'scoped memory for tpu_custom_call.1']
    #allocation9 [shape = 'u8[8192]{0}', space=vmem, size = 0x2000, scoped, tag = 'input window, operand 2, single buffered']
    #allocation10 [shape = 's32[1]{0}', space=sflag, size = 0x4, scoped, tag = 'scoped memory for tpu_custom_call.1']
    #allocation11 [shape = 'u8[8192]{0}', space=vmem, size = 0x2000, scoped, tag = 'input window, operand 3, single buffered']
    #allocation12 [shape = 'u8[16384]{0}', space=vmem, size = 0x4000, scoped, tag = 'output window, operand 0']
    %12 = vsyncpa [#allocation7], 0
    %s13 = scalar_lea.sflag [#allocation7], 1
    %14 = vsyncpa %s13, 0
    %15 = vsyncpa [#allocation10], 0
    %16 = vsyncpa [#allocation8], 0
    %s17 = scalar_lea.sflag [#allocation8], 1
    %18 = vsyncpa %s17, 0
    loop: start=0, step=1, limit=6
    $region2: #{tpu_custom_call.1} parent=1 // loop_pre_header
      _
    $region3: #{tpu_custom_call.1} parent=1 // loop_header
      %s20 = sphi 0, %s24
      %p21 = scmp.ge.s32.totalorder %s20, 6
      %s27 = sphi 0, %s39
      %s28 = sphi 0, %s35
      %s29 = sphi 0, %s27
      %s30 = sphi 0, %s28
      %s31 = sphi 0, %s29
      %s32 = sphi 0, %s30
      %s44 = sphi 0, %s46
      %s47 = sphi 0, %s44
      %s48 = sphi 0, %s47
      %s64 = sphi 0, %s48
      %s70 = sphi 0, %s72
      %s73 = sphi 0, %s70
      %s74 = sphi 0, %s73
      %s90 = sphi 0, %s74
      %s94 = sphi 0, %s94
      %s96 = sphi 0, %s94
      %s97 = sphi 0, %s96
      %s111 = sphi 0, %s97
      %s115 = sphi 0, %s115
      %s117 = sphi 0, %s115
      %s118 = sphi 0, %s117
      %s132 = sphi 0, %s118
      %s136 = sphi 0, %s136
      %s138 = sphi 0, %s136
      %s139 = sphi 0, %s138
      %s153 = sphi 0, %s139
      %s157 = sphi 0, %s157
      %s159 = sphi 0, %s157
      %s160 = sphi 0, %s159
      %s174 = sphi 0, %s160
      %s178 = sphi 0, %s178
      %s180 = sphi 0, %s178
      %s181 = sphi 0, %s180
      %s195 = sphi 0, %s181
      %s201 = sphi 0, %s203
      %s204 = sphi 0, %s201
      %s205 = sphi 0, %s204
      %s221 = sphi 0, %s205
    $region4: #{tpu_custom_call.1} parent=1 // loop_header_branch
      %23 = sbr.rel (%p21) target = $region8
    $region5: #{tpu_custom_call.1} parent=1 // loop_body
      %s25 = ssub.s32 %s20, 1
      %s26 = ssub.s32 %s20, 2
      %s33 = sadd.s32 1, %s28
      %p34 = scmp.ge.s32.totalorder %s33, 2
      %s35 = scalar_select %p34, 0, %s33
      %s36 = sadd.s32 1, %s27
      %s37 = scalar_select %p34, %s36, %s27
      %p38 = scmp.ge.s32.totalorder %s37, 2
      %s39 = scalar_select %p38, 0, %s37
      %s40 = ssub.s32 %s28, %s35
      %s41 = ssub.s32 %s27, %s39
      %s42 = sor.u32 %s40, %s41
      %p43 = scmp.eq.s32.totalorder %s42, 0
      %s45 = sadd.s32 %s44, 1
      %s46 = scalar_select %p43, %s44, %s45
      %p49 = pneg %p43
      %p50 = scmp.eq.s32.totalorder %s20, 3
      %p51 = por %p49, %p50
      %p52 = scmp.ne.s32.totalorder %s44, %s47
      %p53 = scmp.eq.s32.totalorder %s20, 0
      %p54 = por %p52, %p53
      %p55 = scmp.ne.s32.totalorder %s44, %s47
      %p56 = scmp.eq.s32.totalorder %s25, 3
      %p57 = por %p55, %p56
      %p58 = scmp.ne.s32.totalorder %s47, %s48
      %p59 = scmp.eq.s32.totalorder %s25, 0
      %p60 = por %p58, %p59
      %p61 = scmp.ne.s32.totalorder %s47, %s48
      %p62 = scmp.eq.s32.totalorder %s26, 3
      %p63 = por %p61, %p62
      %p65 = scmp.ne.s32.totalorder %s48, %s64
      %p66 = scmp.eq.s32.totalorder %s26, 0
      %p67 = por %p65, %p66
      %s68 = ssub.s32 %s27, %s39
      %p69 = scmp.eq.s32.totalorder %s68, 0
      %s71 = sadd.s32 %s70, 1
      %s72 = scalar_select %p69, %s70, %s71
      %p75 = pneg %p69
      %p76 = scmp.eq.s32.totalorder %s20, 3
      %p77 = por %p75, %p76
      %p78 = scmp.ne.s32.totalorder %s70, %s73
      %p79 = scmp.eq.s32.totalorder %s20, 0
      %p80 = por %p78, %p79
      %p81 = scmp.ne.s32.totalorder %s70, %s73
      %p82 = scmp.eq.s32.totalorder %s25, 3
      %p83 = por %p81, %p82
      %p84 = scmp.ne.s32.totalorder %s73, %s74
      %p85 = scmp.eq.s32.totalorder %s25, 0
      %p86 = por %p84, %p85
      %p87 = scmp.ne.s32.totalorder %s73, %s74
      %p88 = scmp.eq.s32.totalorder %s26, 3
      %p89 = por %p87, %p88
      %p91 = scmp.ne.s32.totalorder %s74, %s90
      %p92 = scmp.eq.s32.totalorder %s26, 0
      %p93 = por %p91, %p92
      %s95 = sadd.s32 %s94, 1
      %p98 = scmp.eq.s32.totalorder %s20, 3
      %p99 = scmp.ne.s32.totalorder %s94, %s96
      %p100 = scmp.eq.s32.totalorder %s20, 0
      %p101 = por %p99, %p100
      %p102 = scmp.ne.s32.totalorder %s94, %s96
      %p103 = scmp.eq.s32.totalorder %s25, 3
      %p104 = por %p102, %p103
      %p105 = scmp.ne.s32.totalorder %s96, %s97
      %p106 = scmp.eq.s32.totalorder %s25, 0
      %p107 = por %p105, %p106
      %p108 = scmp.ne.s32.totalorder %s96, %s97
      %p109 = scmp.eq.s32.totalorder %s26, 3
      %p110 = por %p108, %p109
      %p112 = scmp.ne.s32.totalorder %s97, %s111
      %p113 = scmp.eq.s32.totalorder %s26, 0
      %p114 = por %p112, %p113
      %s116 = sadd.s32 %s115, 1
      %p119 = scmp.eq.s32.totalorder %s20, 3
      %p120 = scmp.ne.s32.totalorder %s115, %s117
      %p121 = scmp.eq.s32.totalorder %s20, 0
      %p122 = por %p120, %p121
      %p123 = scmp.ne.s32.totalorder %s115, %s117
      %p124 = scmp.eq.s32.totalorder %s25, 3
      %p125 = por %p123, %p124
      %p126 = scmp.ne.s32.totalorder %s117, %s118
      %p127 = scmp.eq.s32.totalorder %s25, 0
      %p128 = por %p126, %p127
      %p129 = scmp.ne.s32.totalorder %s117, %s118
      %p130 = scmp.eq.s32.totalorder %s26, 3
      %p131 = por %p129, %p130
      %p133 = scmp.ne.s32.totalorder %s118, %s132
      %p134 = scmp.eq.s32.totalorder %s26, 0
      %p135 = por %p133, %p134
      %s137 = sadd.s32 %s136, 1
      %p140 = scmp.eq.s32.totalorder %s20, 3
      %p141 = scmp.ne.s32.totalorder %s136, %s138
      %p142 = scmp.eq.s32.totalorder %s20, 0
      %p143 = por %p141, %p142
      %p144 = scmp.ne.s32.totalorder %s136, %s138
      %p145 = scmp.eq.s32.totalorder %s25, 3
      %p146 = por %p144, %p145
      %p147 = scmp.ne.s32.totalorder %s138, %s139
      %p148 = scmp.eq.s32.totalorder %s25, 0
      %p149 = por %p147, %p148
      %p150 = scmp.ne.s32.totalorder %s138, %s139
      %p151 = scmp.eq.s32.totalorder %s26, 3
      %p152 = por %p150, %p151
      %p154 = scmp.ne.s32.totalorder %s139, %s153
      %p155 = scmp.eq.s32.totalorder %s26, 0
      %p156 = por %p154, %p155
      %s158 = sadd.s32 %s157, 1
      %p161 = scmp.eq.s32.totalorder %s20, 3
      %p162 = scmp.ne.s32.totalorder %s157, %s159
      %p163 = scmp.eq.s32.totalorder %s20, 0
      %p164 = por %p162, %p163
      %p165 = scmp.ne.s32.totalorder %s157, %s159
      %p166 = scmp.eq.s32.totalorder %s25, 3
      %p167 = por %p165, %p166
      %p168 = scmp.ne.s32.totalorder %s159, %s160
      %p169 = scmp.eq.s32.totalorder %s25, 0
      %p170 = por %p168, %p169
      %p171 = scmp.ne.s32.totalorder %s159, %s160
      %p172 = scmp.eq.s32.totalorder %s26, 3
      %p173 = por %p171, %p172
      %p175 = scmp.ne.s32.totalorder %s160, %s174
      %p176 = scmp.eq.s32.totalorder %s26, 0
      %p177 = por %p175, %p176
      %s179 = sadd.s32 %s178, 1
      %p182 = scmp.eq.s32.totalorder %s20, 3
      %p183 = scmp.ne.s32.totalorder %s178, %s180
      %p184 = scmp.eq.s32.totalorder %s20, 0
      %p185 = por %p183, %p184
      %p186 = scmp.ne.s32.totalorder %s178, %s180
      %p187 = scmp.eq.s32.totalorder %s25, 3
      %p188 = por %p186, %p187
      %p189 = scmp.ne.s32.totalorder %s180, %s181
      %p190 = scmp.eq.s32.totalorder %s25, 0
      %p191 = por %p189, %p190
      %p192 = scmp.ne.s32.totalorder %s180, %s181
      %p193 = scmp.eq.s32.totalorder %s26, 3
      %p194 = por %p192, %p193
      %p196 = scmp.ne.s32.totalorder %s181, %s195
      %p197 = scmp.eq.s32.totalorder %s26, 0
      %p198 = por %p196, %p197
      %s199 = ssub.s32 %s27, %s39
      %p200 = scmp.eq.s32.totalorder %s199, 0
      %s202 = sadd.s32 %s201, 1
      %s203 = scalar_select %p200, %s201, %s202
      %p206 = pneg %p200
      %p207 = scmp.eq.s32.totalorder %s20, 3
      %p208 = por %p206, %p207
      %p209 = scmp.ne.s32.totalorder %s201, %s204
      %p210 = scmp.eq.s32.totalorder %s20, 0
      %p211 = por %p209, %p210
      %p212 = scmp.ne.s32.totalorder %s201, %s204
      %p213 = scmp.eq.s32.totalorder %s25, 3
      %p214 = por %p212, %p213
      %p215 = scmp.ne.s32.totalorder %s204, %s205
      %p216 = scmp.eq.s32.totalorder %s25, 0
      %p217 = por %p215, %p216
      %p218 = scmp.ne.s32.totalorder %s204, %s205
      %p219 = scmp.eq.s32.totalorder %s26, 3
      %p220 = por %p218, %p219
      %p222 = scmp.ne.s32.totalorder %s205, %s221
      %p223 = scmp.eq.s32.totalorder %s26, 0
      %p224 = por %p222, %p223
      %p225 = scmp.le.s32.totalorder 1, %s20
      %p226 = scmp.lt.s32.totalorder %s20, 5
      %p227 = pnand %p225, %p226
      %p228 = pneg %p227
      // Predicated region
      $region9: #{tpu_custom_call.1} parent=5 // pred_check
        _
      $region10: #{tpu_custom_call.1} parent=5 // pred_check_branch
        %230 = sbr.rel (%p227) target = $region12
      $region11: #{tpu_custom_call.1} parent=5 // pred_region
        %s231 = ssub.s32 %s20, 1
        // Predicated region
        $region13: #{tpu_custom_call.1} parent=11 // pred_check
          %p232 = pneg %p107
        $region14: #{tpu_custom_call.1} parent=11 // pred_check_branch
          %234 = sbr.rel (%p232) target = $region16
        $region15: #{tpu_custom_call.1} parent=11 // pred_region
          %236 = vsyncadd [#allocation10], 0
          %s237 = sshll.u32 %s2, 4
          %s238 = int_to_ptr.hbm [resolvable:$true] %s237
          %s239 = sshll.u32 [#allocation9], 4
          %s240 = int_to_ptr.vmem [resolvable:$true] %s239
          %245 = dma.hbm_to_vmem [thread:$0]  %s238, 256, %s240, [#allocation10], 64, 64, 4
        $region16: #{tpu_custom_call.1} parent=11 // pred_fallthru
          _
        // Predicated region
        $region17: #{tpu_custom_call.1} parent=11 // pred_check
          %p246 = pneg %p128
        $region18: #{tpu_custom_call.1} parent=11 // pred_check_branch
          %248 = sbr.rel (%p246) target = $region20
        $region19: #{tpu_custom_call.1} parent=11 // pred_region
          %250 = vsyncadd [#allocation10], 0
          %s251 = sshll.u32 %s3, 4
          %s252 = int_to_ptr.hbm [resolvable:$true] %s251
          %s253 = sshll.u32 [#allocation11], 4
          %s254 = int_to_ptr.vmem [resolvable:$true] %s253
          %259 = dma.hbm_to_vmem [thread:$0]  %s252, 256, %s254, [#allocation10], 64, 64, 4
        $region20: #{tpu_custom_call.1} parent=11 // pred_fallthru
          _
        // Predicated region
        $region21: #{tpu_custom_call.1} parent=11 // pred_check
          %p260 = pneg %p149
        $region22: #{tpu_custom_call.1} parent=11 // pred_check_branch
          %262 = sbr.rel (%p260) target = $region24
        $region23: #{tpu_custom_call.1} parent=11 // pred_region
          _
        $region24: #{tpu_custom_call.1} parent=11 // pred_fallthru
          _
        // Predicated region
        $region25: #{tpu_custom_call.1} parent=11 // pred_check
          %p263 = pneg %p170
        $region26: #{tpu_custom_call.1} parent=11 // pred_check_branch
          %265 = sbr.rel (%p263) target = $region28
        $region27: #{tpu_custom_call.1} parent=11 // pred_region
          _
        $region28: #{tpu_custom_call.1} parent=11 // pred_fallthru
          _
        // Predicated region
        $region29: #{tpu_custom_call.1} parent=11 // pred_check
          %p266 = pneg %p191
        $region30: #{tpu_custom_call.1} parent=11 // pred_check_branch
          %268 = sbr.rel (%p266) target = $region32
        $region31: #{tpu_custom_call.1} parent=11 // pred_region
          _
        $region32: #{tpu_custom_call.1} parent=11 // pred_fallthru
          _
      $region12: #{tpu_custom_call.1} parent=5 // pred_fallthru
        _
      %p269 = scmp.lt.s32.totalorder %s20, 4
      // Predicated region
      $region33: #{tpu_custom_call.1} parent=5 // pred_check
        %p270 = pneg %p269
      $region34: #{tpu_custom_call.1} parent=5 // pred_check_branch
        %272 = sbr.rel (%p270) target = $region36
      $region35: #{tpu_custom_call.1} parent=5 // pred_region
        // Predicated region
        $region37: #{tpu_custom_call.1} parent=35 // pred_check
          %p273 = pneg %p54
        $region38: #{tpu_custom_call.1} parent=35 // pred_check_branch
          %275 = sbr.rel (%p273) target = $region40
        $region39: #{tpu_custom_call.1} parent=35 // pred_region
          #allocation14 [shape = 'u32[6]{0}', space=smem, size = 0x18, scoped, tag = 'DMA stride descriptor']
          %s276 = sand.u32 %s44, 1
          %s277 = scalar_lea.sflag [#allocation7], %s276
          %s278 = sand.u32 %s44, 1
          %s279 = smul.addr %s278, 64
          %s280 = scalar_lea.vmem [#allocation6], %s279
          %s281 = smul.u32 8, %s28
          %s282 = smul.u32 2, %s27
          %284 = vsyncadd %s277, 0
          %s285 = smul.addr %s281, 4
          %s286 = sadd.s32 %s282, %s285
          %s287 = smul.addr %s286, 4
          %s288 = scalar_lea.hbm %s0, %s287
          %s290 = sshll.u32 1, 14
          %s291 = sxor.u32 4294967295, %s290
          %s293 = sld [smem:[#allocation0]]
          %s294 = sadd.s32 2, %s293
          %s296 = sshll.u32 7, 26
          %s297 = sxor.u32 4294967295, %s296
          %s298 = sand.u32 0, %s297
          %s299 = sshll.u32 %s294, 26
          %s300 = sor.u32 %s298, %s299
          %s301 = sshll.u32 %s288, 4
          %s302 = int_to_ptr.hbm [resolvable:$true] %s301
          %s303 = sshll.u32 %s280, 4
          %s304 = int_to_ptr.vmem [resolvable:$true] %s303
          %310 = sst [smem:[#allocation14]] 256
          %s311 = scalar_lea.smem [#allocation14], 1
          %312 = sst [smem:[%s311]] 128
          %s313 = scalar_lea.smem [#allocation14], 2
          %314 = sst [smem:[%s313]] 2
          %s315 = scalar_lea.smem [#allocation14], 3
          %316 = sst [smem:[%s315]] 64
          %s317 = scalar_lea.smem [#allocation14], 4
          %318 = sst [smem:[%s317]] 64
          %s319 = scalar_lea.smem [#allocation14], 5
          %320 = sst [smem:[%s319]] 4
          %322 = dma.general %s302, 1024, %s304, %s277, [#allocation13], [#allocation14], %s300, 0
        $region40: #{tpu_custom_call.1} parent=35 // pred_fallthru
          _
        // Predicated region
        $region41: #{tpu_custom_call.1} parent=35 // pred_check
          %p323 = pneg %p80
        $region42: #{tpu_custom_call.1} parent=35 // pred_check_branch
          %325 = sbr.rel (%p323) target = $region44
        $region43: #{tpu_custom_call.1} parent=35 // pred_region
          %s326 = smul.u32 2, %s27
          %p327 = scmp.lt.s32.totalorder %s326, 3
          %s328 = scalar_select %p327, %s326, 3
          %s329 = smul.addr %s328, 8
          %s330 = scalar_lea.vmem %s1, %s329
          %s331 = smul.u32 2, %s27
        $region44: #{tpu_custom_call.1} parent=35 // pred_fallthru
          _
      $region36: #{tpu_custom_call.1} parent=5 // pred_fallthru
        _
      %p332 = scmp.le.s32.totalorder 1, %s20
      %p333 = scmp.lt.s32.totalorder %s20, 5
      %p334 = pnand %p332, %p333
      %p335 = pneg %p334
      // Predicated region
      $region45: #{tpu_custom_call.1} parent=5 // pred_check
        _
      $region46: #{tpu_custom_call.1} parent=5 // pred_check_branch
        %337 = sbr.rel (%p334) target = $region48
      $region47: #{tpu_custom_call.1} parent=5 // pred_region
        %s338 = ssub.s32 %s20, 1
        %s339 = sand.u32 %s47, 1
        %s340 = scalar_lea.sflag [#allocation7], %s339
        %s341 = sand.u32 %s47, 1
        %s342 = smul.addr %s341, 64
        %s343 = scalar_lea.vmem [#allocation6], %s342
        // Predicated region
        $region49: #{tpu_custom_call.1} parent=47 // pred_check
          %p344 = pneg %p60
        $region50: #{tpu_custom_call.1} parent=47 // pred_check_branch
          %346 = sbr.rel (%p344) target = $region52
        $region51: #{tpu_custom_call.1} parent=47 // pred_region
          %348 = dma.done %s340, 1024
        $region52: #{tpu_custom_call.1} parent=47 // pred_fallthru
          _
        // Predicated region
        $region53: #{tpu_custom_call.1} parent=47 // pred_check
          %p349 = pneg %p107
        $region54: #{tpu_custom_call.1} parent=47 // pred_check_branch
          %351 = sbr.rel (%p349) target = $region56
        $region55: #{tpu_custom_call.1} parent=47 // pred_region
          %353 = dma.done [#allocation10], 256
        $region56: #{tpu_custom_call.1} parent=47 // pred_fallthru
          _
        // Predicated region
        $region57: #{tpu_custom_call.1} parent=47 // pred_check
          %p354 = pneg %p128
        $region58: #{tpu_custom_call.1} parent=47 // pred_check_branch
          %356 = sbr.rel (%p354) target = $region60
        $region59: #{tpu_custom_call.1} parent=47 // pred_region
          %358 = dma.done [#allocation10], 256
        $region60: #{tpu_custom_call.1} parent=47 // pred_fallthru
          _
        %s359 = sand.u32 %s47, 1
        %s360 = scalar_lea.sflag [#allocation7], %s359
        %s361 = sand.u32 %s47, 1
        %s362 = smul.addr %s361, 64
        %s363 = scalar_lea.vmem [#allocation6], %s362
        %p364 = pneg %p60
        %p365 = pneg %p57
        %s366 = smul.u32 2, %s29
        %p367 = scmp.lt.s32.totalorder %s366, 3
        %s368 = scalar_select %p367, %s366, 3
        %s369 = smul.addr %s368, 8
        %s370 = scalar_lea.vmem %s1, %s369
        %p371 = pneg %p86
        %p372 = pneg %p83
        %p373 = pneg %p107
        %p374 = pneg %p104
        %p375 = pneg %p128
        %p376 = pneg %p125
        %p377 = pneg %p149
        %p378 = pneg %p146
        %p379 = pneg %p170
        %p380 = pneg %p167
        %p381 = pneg %p191
        %p382 = pneg %p188
        %p383 = pneg %p217
        %p384 = pneg %p214
        %s385 = sand.u32 %s204, 1
        %s386 = scalar_lea.sflag [#allocation8], %s385
        %s387 = sand.u32 %s204, 1
        %s388 = smul.addr %s387, 16
        %s389 = scalar_lea.vmem [#allocation12], %s388
        %s390 = smul.u32 8, %s30
        %s391 = smul.u32 2, %s29
        %s392 = smul.u32 2, %s29
        %p393 = scmp.lt.s32.totalorder %s392, 3
        %s394 = scalar_select %p393, %s392, 3
        %s395 = smul.addr %s394, 8
        %s396 = scalar_lea.vmem %s1, %s395
        %s397 = smul.u32 2, %s29
        %s398 = smul.u32 2, %s29
        %p400 = scmp.eq.s32.totalorder %s30, 0
        // Predicated region
        $region61: #{tpu_custom_call.1} parent=47 // pred_check
          %p401 = pneg %p400
        $region62: #{tpu_custom_call.1} parent=47 // pred_check_branch
          %403 = sbr.rel (%p401) target = $region64
        $region63: #{tpu_custom_call.1} parent=47 // pred_region
          %vm404 = vcmask 261120
          %405 = vst.msk [vmem:[#allocation3] sm:$0xff] %vm404, 0.0
          %406 = vst.msk [vmem:[#allocation3 + $0x8] sm:$0xff] %vm404, 0.0
          %407 = vst.msk [vmem:[#allocation4] sm:$0xff] %vm404, 0.0
          %408 = vst.msk [vmem:[#allocation4 + $0x8] sm:$0xff] %vm404, 0.0
          %409 = vst.msk [vmem:[#allocation5] sm:$0xff] %vm404, 0.0
          %410 = vst.msk [vmem:[#allocation5 + $0x8] sm:$0xff] %vm404, 0.0
        $region64: #{tpu_custom_call.1} parent=47 // pred_fallthru
          _
        %v411 = vld [vmem:[#allocation9] sm:$0xf]
        %v412 = vld [vmem:[#allocation9 + $0x4] sm:$0xf]
        %v413 = vld [vmem:[#allocation9 + $0x8] sm:$0xf]
        %v414 = vld [vmem:[#allocation9 + $0xc] sm:$0xf]
        %v415 = vld [vmem:[%s4] sm:$0x1]
        %v416 = vld [vmem:[%s343] sm:$0xf]
        %v417 = vld [vmem:[%s343 + $0x4] sm:$0xf]
        %v419 = vperm.slane %v415, 0
        %v423 = vunpack.c.l.b16 %v416
        %v424 = vunpack.c.l.b16 %v417
        %v425 = vpack.c.b16 %v424, %v423
        %v430 = vunpack.c.l.b16 %v411
        %v431 = vunpack.c.l.b16 %v412
        %v432 = vunpack.c.l.b16 %v413
        %v433 = vunpack.c.l.b16 %v414
        %v434 = vpack.c.b16 %v431, %v430
        %v435 = vpack.c.b16 %v433, %v432
        %vm438 = vcmask 261120
        %v440 = vsel %vm438, %v425, 0
        %442 = vmatpush.bf16.msra.mxu0 0
        %443 = vmatpush.bf16.msra.mxu0 0
        %444 = vmatpush.bf16.msra.mxu0 0
        %445 = vmatpush.bf16.msra.mxu0 0
        %446 = vmatpush.bf16.msra.mxu0 0
        %447 = vmatpush.bf16.msra.mxu0 0
        %448 = vmatpush.bf16.msra.mxu0 %v435
        %449 = vmatpush.bf16.msra.mxu0 %v434
        %450 = vmatmul.bf16.gmra.mxu0 %v440
        %v451 = vpop.f32.mrf.mxu0
        %v452 = vadd.f32 %v419, %v451
        %v453 = vpop.f32.mrf.mxu0
        %v454 = vadd.f32 %v419, %v453
        %455 = vdwg.mxu0
        %456 = vst [vmem:[#allocation2] sm:$0xff] %v452
        %457 = vst [vmem:[#allocation2 + $0x8] sm:$0xff] %v454
        %s458 = scalar_lea.vmem %s343, 8 [#allocation6]
        %v459 = vld [vmem:[%s458] sm:$0xf]
        %v460 = vld [vmem:[%s458 + $0x4] sm:$0xf]
        %v463 = vunpack.c.l.b16 %v459
        %v464 = vunpack.c.l.b16 %v460
        %v465 = vpack.c.b16 %v464, %v463
        %v467 = vsel %vm438, %v465, 0
        %469 = vmatpush.bf16.msra.mxu0 0
        %470 = vmatpush.bf16.msra.mxu0 0
        %471 = vmatpush.bf16.msra.mxu0 0
        %472 = vmatpush.bf16.msra.mxu0 0
        %473 = vmatpush.bf16.msra.mxu0 0
        %474 = vmatpush.bf16.msra.mxu0 0
        %475 = vmatpush.bf16.msra.mxu0 %v435
        %476 = vmatpush.bf16.msra.mxu0 %v434
        %477 = vmatmul.bf16.gmra.mxu0 %v467
        %v478 = vpop.f32.mrf.mxu0
        %v479 = vadd.f32 %v419, %v478
        %v480 = vpop.f32.mrf.mxu0
        %v481 = vadd.f32 %v419, %v480
        %482 = vdwg.mxu0
        %s483 = scalar_lea.vmem [#allocation2], 16
        %484 = vst [vmem:[%s483] sm:$0xff] %v479
        %485 = vst [vmem:[%s483 + $0x8] sm:$0xff] %v481
        %s486 = scalar_lea.vmem %s343, 16 [#allocation6]
        %v487 = vld [vmem:[%s486] sm:$0xf]
        %v488 = vld [vmem:[%s486 + $0x4] sm:$0xf]
        %v491 = vunpack.c.l.b16 %v487
        %v492 = vunpack.c.l.b16 %v488
        %v493 = vpack.c.b16 %v492, %v491
        %v495 = vsel %vm438, %v493, 0
        %497 = vmatpush.bf16.msra.mxu0 0
        %498 = vmatpush.bf16.msra.mxu0 0
        %499 = vmatpush.bf16.msra.mxu0 0
        %500 = vmatpush.bf16.msra.mxu0 0
        %501 = vmatpush.bf16.msra.mxu0 0
        %502 = vmatpush.bf16.msra.mxu0 0
        %503 = vmatpush.bf16.msra.mxu0 %v435
        %504 = vmatpush.bf16.msra.mxu0 %v434
        %505 = vmatmul.bf16.gmra.mxu0 %v495
        %v506 = vpop.f32.mrf.mxu0
        %v507 = vadd.f32 %v419, %v506
        %v508 = vpop.f32.mrf.mxu0
        %v509 = vadd.f32 %v419, %v508
        %510 = vdwg.mxu0
        %s511 = scalar_lea.vmem [#allocation2], 32
        %512 = vst [vmem:[%s511] sm:$0xff] %v507
        %513 = vst [vmem:[%s511 + $0x8] sm:$0xff] %v509
        %s514 = scalar_lea.vmem %s343, 24 [#allocation6]
        %v515 = vld [vmem:[%s514] sm:$0xf]
        %v516 = vld [vmem:[%s514 + $0x4] sm:$0xf]
        %v519 = vunpack.c.l.b16 %v515
        %v520 = vunpack.c.l.b16 %v516
        %v521 = vpack.c.b16 %v520, %v519
        %v523 = vsel %vm438, %v521, 0
        %525 = vmatpush.bf16.msra.mxu0 0
        %526 = vmatpush.bf16.msra.mxu0 0
        %527 = vmatpush.bf16.msra.mxu0 0
        %528 = vmatpush.bf16.msra.mxu0 0
        %529 = vmatpush.bf16.msra.mxu0 0
        %530 = vmatpush.bf16.msra.mxu0 0
        %531 = vmatpush.bf16.msra.mxu0 %v435
        %532 = vmatpush.bf16.msra.mxu0 %v434
        %533 = vmatmul.bf16.gmra.mxu0 %v523
        %v534 = vpop.f32.mrf.mxu0
        %v535 = vadd.f32 %v419, %v534
        %v536 = vpop.f32.mrf.mxu0
        %v537 = vadd.f32 %v419, %v536
        %538 = vdwg.mxu0
        %s539 = scalar_lea.vmem [#allocation2], 48
        %540 = vst [vmem:[%s539] sm:$0xff] %v535
        %541 = vst [vmem:[%s539 + $0x8] sm:$0xff] %v537
        %s542 = scalar_lea.vmem %s343, 32 [#allocation6]
        %v543 = vld [vmem:[%s542] sm:$0xf]
        %v544 = vld [vmem:[%s542 + $0x4] sm:$0xf]
        %v547 = vunpack.c.l.b16 %v543
        %v548 = vunpack.c.l.b16 %v544
        %v549 = vpack.c.b16 %v548, %v547
        %v551 = vsel %vm438, %v549, 0
        %553 = vmatpush.bf16.msra.mxu0 0
        %554 = vmatpush.bf16.msra.mxu0 0
        %555 = vmatpush.bf16.msra.mxu0 0
        %556 = vmatpush.bf16.msra.mxu0 0
        %557 = vmatpush.bf16.msra.mxu0 0
        %558 = vmatpush.bf16.msra.mxu0 0
        %559 = vmatpush.bf16.msra.mxu0 %v435
        %560 = vmatpush.bf16.msra.mxu0 %v434
        %561 = vmatmul.bf16.gmra.mxu0 %v551
        %v562 = vpop.f32.mrf.mxu0
        %v563 = vadd.f32 %v419, %v562
        %v564 = vpop.f32.mrf.mxu0
        %v565 = vadd.f32 %v419, %v564
        %566 = vdwg.mxu0
        %s567 = scalar_lea.vmem [#allocation2], 64
        %568 = vst [vmem:[%s567] sm:$0xff] %v563
        %569 = vst [vmem:[%s567 + $0x8] sm:$0xff] %v565
        %s570 = scalar_lea.vmem %s343, 40 [#allocation6]
        %v571 = vld [vmem:[%s570] sm:$0xf]
        %v572 = vld [vmem:[%s570 + $0x4] sm:$0xf]
        %v575 = vunpack.c.l.b16 %v571
        %v576 = vunpack.c.l.b16 %v572
        %v577 = vpack.c.b16 %v576, %v575
        %v579 = vsel %vm438, %v577, 0
        %581 = vmatpush.bf16.msra.mxu0 0
        %582 = vmatpush.bf16.msra.mxu0 0
        %583 = vmatpush.bf16.msra.mxu0 0
        %584 = vmatpush.bf16.msra.mxu0 0
        %585 = vmatpush.bf16.msra.mxu0 0
        %586 = vmatpush.bf16.msra.mxu0 0
        %587 = vmatpush.bf16.msra.mxu0 %v435
        %588 = vmatpush.bf16.msra.mxu0 %v434
        %589 = vmatmul.bf16.gmra.mxu0 %v579
        %v590 = vpop.f32.mrf.mxu0
        %v591 = vadd.f32 %v419, %v590
        %v592 = vpop.f32.mrf.mxu0
        %v593 = vadd.f32 %v419, %v592
        %594 = vdwg.mxu0
        %s595 = scalar_lea.vmem [#allocation2], 80
        %596 = vst [vmem:[%s595] sm:$0xff] %v591
        %597 = vst [vmem:[%s595 + $0x8] sm:$0xff] %v593
        %s598 = scalar_lea.vmem %s343, 48 [#allocation6]
        %v599 = vld [vmem:[%s598] sm:$0xf]
        %v600 = vld [vmem:[%s598 + $0x4] sm:$0xf]
        %v603 = vunpack.c.l.b16 %v599
        %v604 = vunpack.c.l.b16 %v600
        %v605 = vpack.c.b16 %v604, %v603
        %v607 = vsel %vm438, %v605, 0
        %609 = vmatpush.bf16.msra.mxu0 0
        %610 = vmatpush.bf16.msra.mxu0 0
        %611 = vmatpush.bf16.msra.mxu0 0
        %612 = vmatpush.bf16.msra.mxu0 0
        %613 = vmatpush.bf16.msra.mxu0 0
        %614 = vmatpush.bf16.msra.mxu0 0
        %615 = vmatpush.bf16.msra.mxu0 %v435
        %616 = vmatpush.bf16.msra.mxu0 %v434
        %617 = vmatmul.bf16.gmra.mxu0 %v607
        %v618 = vpop.f32.mrf.mxu0
        %v619 = vadd.f32 %v419, %v618
        %v620 = vpop.f32.mrf.mxu0
        %v621 = vadd.f32 %v419, %v620
        %622 = vdwg.mxu0
        %s623 = scalar_lea.vmem [#allocation2], 96
        %624 = vst [vmem:[%s623] sm:$0xff] %v619
        %625 = vst [vmem:[%s623 + $0x8] sm:$0xff] %v621
        %s626 = scalar_lea.vmem %s343, 56 [#allocation6]
        %v627 = vld [vmem:[%s626] sm:$0xf]
        %v628 = vld [vmem:[%s626 + $0x4] sm:$0xf]
        %v631 = vunpack.c.l.b16 %v627
        %v632 = vunpack.c.l.b16 %v628
        %v633 = vpack.c.b16 %v632, %v631
        %v635 = vsel %vm438, %v633, 0
        %637 = vmatpush.bf16.msra.mxu0 0
        %638 = vmatpush.bf16.msra.mxu0 0
        %639 = vmatpush.bf16.msra.mxu0 0
        %640 = vmatpush.bf16.msra.mxu0 0
        %641 = vmatpush.bf16.msra.mxu0 0
        %642 = vmatpush.bf16.msra.mxu0 0
        %643 = vmatpush.bf16.msra.mxu0 %v435
        %644 = vmatpush.bf16.msra.mxu0 %v434
        %645 = vmatmul.bf16.gmra.mxu0 %v635
        %v646 = vpop.f32.mrf.mxu0
        %v647 = vadd.f32 %v419, %v646
        %v648 = vpop.f32.mrf.mxu0
        %v649 = vadd.f32 %v419, %v648
        %650 = vdwg.mxu0
        %s651 = scalar_lea.vmem [#allocation2], 112
        %652 = vst [vmem:[%s651] sm:$0xff] %v647
        %653 = vst [vmem:[%s651 + $0x8] sm:$0xff] %v649
        %v654 = vld [vmem:[#allocation11] sm:$0xf]
        %v655 = vld [vmem:[#allocation11 + $0x4] sm:$0xf]
        %v656 = vld [vmem:[#allocation11 + $0x8] sm:$0xf]
        %v657 = vld [vmem:[#allocation11 + $0xc] sm:$0xf]
        %v658 = vld [vmem:[%s396] sm:$0xff]
        %v659 = vld [vmem:[%s396 + $0x8] sm:$0xff]
        %660 = vset.pattern.permute.xlu0 0
        %661 = vperm.xlu0 %660, %v658
        %v662 = vpop.permute.xlu0 %661
        %663 = vset.pattern.permute.xlu0 0
        %664 = vperm.xlu0 %663, %v659
        %v665 = vpop.permute.xlu0 %664
        %s666 = smul.u32 %s30, 8
        %v667 = vld [vmem:[#allocation3] sm:$0xff]
        %v668 = vld [vmem:[#allocation3 + $0x8] sm:$0xff]
        %v669 = vld [vmem:[#allocation4] sm:$0xff]
        %v670 = vld [vmem:[#allocation4 + $0x8] sm:$0xff]
        %v671 = vld [vmem:[#allocation5] sm:$0xff]
        %v672 = vld [vmem:[#allocation5 + $0x8] sm:$0xff]
        %v673 = vld [vmem:[#allocation2] sm:$0xff]
        %v674 = vld [vmem:[#allocation2 + $0x8] sm:$0xff]
        %v675 = vpack.c.bf16 %v668, %v667
        %v680 = vunpack.c.l.b16 %v654
        %v681 = vunpack.c.l.b16 %v655
        %v682 = vunpack.c.l.b16 %v656
        %v683 = vunpack.c.l.b16 %v657
        %v684 = vpack.c.b16 %v681, %v680
        %v685 = vpack.c.b16 %v683, %v682
        %v689 = vsel %vm438, %v675, 0
        %691 = vmatpush.bf16.msra.mxu0 0
        %692 = vmatpush.bf16.msra.mxu0 0
        %693 = vmatpush.bf16.msra.mxu0 0
        %694 = vmatpush.bf16.msra.mxu0 0
        %695 = vmatpush.bf16.msra.mxu0 0
        %696 = vmatpush.bf16.msra.mxu0 0
        %697 = vmatpush.bf16.msra.mxu0 %v685
        %698 = vmatpush.bf16.msra.mxu0 %v684
        %699 = vmatmul.bf16.gmra.mxu0 %v689
        %v700 = vpop.f32.mrf.mxu0
        %v701 = vadd.f32 0.0, %v700
        %v702 = vpop.f32.mrf.mxu0
        %v703 = vadd.f32 0.0, %v702
        %704 = vdwg.mxu0
        %v705 = vadd.f32 %v673, %v701
        %v706 = vadd.f32 %v674, %v703
        %v707 = vxor.u32 %v705, 2147483648
        %v708 = vxor.u32 %v706, 2147483648
        %v709 = vmul.f32 %v707, 1.442695
        %v710 = vpow.pop %v709
        %v711 = vmul.f32 %v708, 1.442695
        %v712 = vpow.pop %v711
        %v713 = vadd.f32 %v710, 1.0
        %v714 = vadd.f32 %v712, 1.0
        %v715 = vrcp.pop %v713
        %v716 = vmul.f32 %v713, %v715
        %v717 = vsub.f32 1.0, %v716
        %v718 = vmul.f32 %v715, %v717
        %v719 = vadd.f32 %v715, %v718
        %vm720 = vweird.f32 %v713
        %vm721 = vweird.f32 %v715
        %vm722 = vmor %vm720, %vm721
        %v723 = vsel %vm722, %v715, %v719
        %v724 = vand.u32 2147483647, %v713
        %vm725 = vcmp.eq.f32.partialorder %v724, 8.507059e+37
        %v726 = vand.u32 %v713, 2147483648
        %v727 = vor.u32 1.1754944e-38, %v726
        %v728 = vsel %vm725, %v727, %v723
        %v729 = vmul.f32 1.0, %v728
        %v730 = vrcp.pop %v714
        %v731 = vmul.f32 %v714, %v730
        %v732 = vsub.f32 1.0, %v731
        %v733 = vmul.f32 %v730, %v732
        %v734 = vadd.f32 %v730, %v733
        %vm735 = vweird.f32 %v714
        %vm736 = vweird.f32 %v730
        %vm737 = vmor %vm735, %vm736
        %v738 = vsel %vm737, %v730, %v734
        %v739 = vand.u32 2147483647, %v714
        %vm740 = vcmp.eq.f32.partialorder %v739, 8.507059e+37
        %v741 = vand.u32 %v714, 2147483648
        %v742 = vor.u32 1.1754944e-38, %v741
        %v743 = vsel %vm740, %v742, %v738
        %v744 = vmul.f32 1.0, %v743
        %v745 = vtanh.pop %v705
        %v746 = vtanh.pop %v706
        %749 = vrot.lane.b32.xlu0 %v669, 32
        %v750 = vpop.permute.xlu0 %749
        %751 = vrot.lane.b32.xlu0 %v670, 32
        %v752 = vpop.permute.xlu0 %751
        %v755 = vmul.f32 %v729, %v750
        %v756 = vmul.f32 %v744, %v752
        %759 = vrot.lane.b32.xlu0 %v745, 64
        %v760 = vpop.permute.xlu0 %759
        %761 = vrot.lane.b32.xlu0 %v746, 64
        %v762 = vpop.permute.xlu0 %761
        %v765 = vmul.f32 %v729, %v760
        %v766 = vmul.f32 %v744, %v762
        %769 = vrot.lane.b32.xlu0 %v765, 32
        %v770 = vpop.permute.xlu0 %769
        %771 = vrot.lane.b32.xlu0 %v766, 32
        %v772 = vpop.permute.xlu0 %771
        %v775 = vadd.f32 %v755, %v770
        %v776 = vadd.f32 %v756, %v772
        %v777 = vtanh.pop %v775
        %v778 = vtanh.pop %v776
        %781 = vrot.lane.b32.xlu0 %v777, 64
        %v782 = vpop.permute.xlu0 %781
        %783 = vrot.lane.b32.xlu0 %v778, 64
        %v784 = vpop.permute.xlu0 %783
        %v787 = vmul.f32 %v729, %v782
        %v788 = vmul.f32 %v744, %v784
        %s789 = sadd.s32 %s666, 1
        %v790 = vstv %s789
        %vm791 = vcmp.eq.s32.totalorder %v662, %v790
        %vm792 = vcmp.eq.s32.totalorder %v665, %v790
        %795 = vrot.lane.b32.xlu0 %v671, 96
        %v796 = vpop.permute.xlu0 %795
        %797 = vrot.lane.b32.xlu0 %v672, 96
        %v798 = vpop.permute.xlu0 %797
        %v801 = vsel %vm791, %v787, %v796
        %v802 = vsel %vm792, %v788, %v798
        %v803 = vld [vmem:[%s483] sm:$0xff]
        %v804 = vld [vmem:[%s483 + $0x8] sm:$0xff]
        %v805 = vpack.c.bf16 %v788, %v787
        %807 = vrot.lane.b32.xlu0 %v805, 32
        %v808 = vpop.permute.xlu0 %807
        %v810 = vsel %vm438, %v808, 0
        %812 = vmatpush.bf16.msra.mxu0 0
        %813 = vmatpush.bf16.msra.mxu0 0
        %814 = vmatpush.bf16.msra.mxu0 0
        %815 = vmatpush.bf16.msra.mxu0 0
        %816 = vmatpush.bf16.msra.mxu0 0
        %817 = vmatpush.bf16.msra.mxu0 0
        %818 = vmatpush.bf16.msra.mxu0 %v685
        %819 = vmatpush.bf16.msra.mxu0 %v684
        %820 = vmatmul.bf16.gmra.mxu0 %v810
        %v821 = vpop.f32.mrf.mxu0
        %v822 = vadd.f32 0.0, %v821
        %v823 = vpop.f32.mrf.mxu0
        %v824 = vadd.f32 0.0, %v823
        %825 = vdwg.mxu0
        %v826 = vadd.f32 %v803, %v822
        %v827 = vadd.f32 %v804, %v824
        %v828 = vxor.u32 %v826, 2147483648
        %v829 = vxor.u32 %v827, 2147483648
        %v830 = vmul.f32 %v828, 1.442695
        %v831 = vpow.pop %v830
        %v832 = vmul.f32 %v829, 1.442695
        %v833 = vpow.pop %v832
        %v834 = vadd.f32 %v831, 1.0
        %v835 = vadd.f32 %v833, 1.0
        %v836 = vrcp.pop %v834
        %v837 = vmul.f32 %v834, %v836
        %v838 = vsub.f32 1.0, %v837
        %v839 = vmul.f32 %v836, %v838
        %v840 = vadd.f32 %v836, %v839
        %vm841 = vweird.f32 %v834
        %vm842 = vweird.f32 %v836
        %vm843 = vmor %vm841, %vm842
        %v844 = vsel %vm843, %v836, %v840
        %v845 = vand.u32 2147483647, %v834
        %vm846 = vcmp.eq.f32.partialorder %v845, 8.507059e+37
        %v847 = vand.u32 %v834, 2147483648
        %v848 = vor.u32 1.1754944e-38, %v847
        %v849 = vsel %vm846, %v848, %v844
        %v850 = vmul.f32 1.0, %v849
        %v851 = vrcp.pop %v835
        %v852 = vmul.f32 %v835, %v851
        %v853 = vsub.f32 1.0, %v852
        %v854 = vmul.f32 %v851, %v853
        %v855 = vadd.f32 %v851, %v854
        %vm856 = vweird.f32 %v835
        %vm857 = vweird.f32 %v851
        %vm858 = vmor %vm856, %vm857
        %v859 = vsel %vm858, %v851, %v855
        %v860 = vand.u32 2147483647, %v835
        %vm861 = vcmp.eq.f32.partialorder %v860, 8.507059e+37
        %v862 = vand.u32 %v835, 2147483648
        %v863 = vor.u32 1.1754944e-38, %v862
        %v864 = vsel %vm861, %v863, %v859
        %v865 = vmul.f32 1.0, %v864
        %v866 = vtanh.pop %v826
        %v867 = vtanh.pop %v827
        %v868 = vmul.f32 %v850, %v775
        %v869 = vmul.f32 %v865, %v776
        %872 = vrot.lane.b32.xlu0 %v866, 64
        %v873 = vpop.permute.xlu0 %872
        %874 = vrot.lane.b32.xlu0 %v867, 64
        %v875 = vpop.permute.xlu0 %874
        %v878 = vmul.f32 %v850, %v873
        %v879 = vmul.f32 %v865, %v875
        %882 = vrot.lane.b32.xlu0 %v878, 32
        %v883 = vpop.permute.xlu0 %882
        %884 = vrot.lane.b32.xlu0 %v879, 32
        %v885 = vpop.permute.xlu0 %884
        %v888 = vadd.f32 %v868, %v883
        %v889 = vadd.f32 %v869, %v885
        %v890 = vtanh.pop %v888
        %v891 = vtanh.pop %v889
        %894 = vrot.lane.b32.xlu0 %v890, 64
        %v895 = vpop.permute.xlu0 %894
        %896 = vrot.lane.b32.xlu0 %v891, 64
        %v897 = vpop.permute.xlu0 %896
        %v900 = vmul.f32 %v850, %v895
        %v901 = vmul.f32 %v865, %v897
        %s902 = sadd.s32 %s666, 2
        %v903 = vstv %s902
        %vm904 = vcmp.eq.s32.totalorder %v662, %v903
        %vm905 = vcmp.eq.s32.totalorder %v665, %v903
        %v906 = vsel %vm904, %v900, %v801
        %v907 = vsel %vm905, %v901, %v802
        %v908 = vld [vmem:[%s511] sm:$0xff]
        %v909 = vld [vmem:[%s511 + $0x8] sm:$0xff]
        %v910 = vpack.c.bf16 %v901, %v900
        %912 = vrot.lane.b32.xlu0 %v910, 32
        %v913 = vpop.permute.xlu0 %912
        %v915 = vsel %vm438, %v913, 0
        %917 = vmatpush.bf16.msra.mxu0 0
        %918 = vmatpush.bf16.msra.mxu0 0
        %919 = vmatpush.bf16.msra.mxu0 0
        %920 = vmatpush.bf16.msra.mxu0 0
        %921 = vmatpush.bf16.msra.mxu0 0
        %922 = vmatpush.bf16.msra.mxu0 0
        %923 = vmatpush.bf16.msra.mxu0 %v685
        %924 = vmatpush.bf16.msra.mxu0 %v684
        %925 = vmatmul.bf16.gmra.mxu0 %v915
        %v926 = vpop.f32.mrf.mxu0
        %v927 = vadd.f32 0.0, %v926
        %v928 = vpop.f32.mrf.mxu0
        %v929 = vadd.f32 0.0, %v928
        %930 = vdwg.mxu0
        %v931 = vadd.f32 %v908, %v927
        %v932 = vadd.f32 %v909, %v929
        %v933 = vxor.u32 %v931, 2147483648
        %v934 = vxor.u32 %v932, 2147483648
        %v935 = vmul.f32 %v933, 1.442695
        %v936 = vpow.pop %v935
        %v937 = vmul.f32 %v934, 1.442695
        %v938 = vpow.pop %v937
        %v939 = vadd.f32 %v936, 1.0
        %v940 = vadd.f32 %v938, 1.0
        %v941 = vrcp.pop %v939
        %v942 = vmul.f32 %v939, %v941
        %v943 = vsub.f32 1.0, %v942
        %v944 = vmul.f32 %v941, %v943
        %v945 = vadd.f32 %v941, %v944
        %vm946 = vweird.f32 %v939
        %vm947 = vweird.f32 %v941
        %vm948 = vmor %vm946, %vm947
        %v949 = vsel %vm948, %v941, %v945
        %v950 = vand.u32 2147483647, %v939
        %vm951 = vcmp.eq.f32.partialorder %v950, 8.507059e+37
        %v952 = vand.u32 %v939, 2147483648
        %v953 = vor.u32 1.1754944e-38, %v952
        %v954 = vsel %vm951, %v953, %v949
        %v955 = vmul.f32 1.0, %v954
        %v956 = vrcp.pop %v940
        %v957 = vmul.f32 %v940, %v956
        %v958 = vsub.f32 1.0, %v957
        %v959 = vmul.f32 %v956, %v958
        %v960 = vadd.f32 %v956, %v959
        %vm961 = vweird.f32 %v940
        %vm962 = vweird.f32 %v956
        %vm963 = vmor %vm961, %vm962
        %v964 = vsel %vm963, %v956, %v960
        %v965 = vand.u32 2147483647, %v940
        %vm966 = vcmp.eq.f32.partialorder %v965, 8.507059e+37
        %v967 = vand.u32 %v940, 2147483648
        %v968 = vor.u32 1.1754944e-38, %v967
        %v969 = vsel %vm966, %v968, %v964
        %v970 = vmul.f32 1.0, %v969
        %v971 = vtanh.pop %v931
        %v972 = vtanh.pop %v932
        %v973 = vmul.f32 %v955, %v888
        %v974 = vmul.f32 %v970, %v889
        %977 = vrot.lane.b32.xlu0 %v971, 64
        %v978 = vpop.permute.xlu0 %977
        %979 = vrot.lane.b32.xlu0 %v972, 64
        %v980 = vpop.permute.xlu0 %979
        %v983 = vmul.f32 %v955, %v978
        %v984 = vmul.f32 %v970, %v980
        %987 = vrot.lane.b32.xlu0 %v983, 32
        %v988 = vpop.permute.xlu0 %987
        %989 = vrot.lane.b32.xlu0 %v984, 32
        %v990 = vpop.permute.xlu0 %989
        %v993 = vadd.f32 %v973, %v988
        %v994 = vadd.f32 %v974, %v990
        %v995 = vtanh.pop %v993
        %v996 = vtanh.pop %v994
        %999 = vrot.lane.b32.xlu0 %v995, 64
        %v1000 = vpop.permute.xlu0 %999
        %1001 = vrot.lane.b32.xlu0 %v996, 64
        %v1002 = vpop.permute.xlu0 %1001
        %v1005 = vmul.f32 %v955, %v1000
        %v1006 = vmul.f32 %v970, %v1002
        %s1007 = sadd.s32 %s666, 3
        %v1008 = vstv %s1007
        %vm1009 = vcmp.eq.s32.totalorder %v662, %v1008
        %vm1010 = vcmp.eq.s32.totalorder %v665, %v1008
        %v1011 = vsel %vm1009, %v1005, %v906
        %v1012 = vsel %vm1010, %v1006, %v907
        %v1013 = vld [vmem:[%s539] sm:$0xff]
        %v1014 = vld [vmem:[%s539 + $0x8] sm:$0xff]
        %v1015 = vpack.c.bf16 %v1006, %v1005
        %1017 = vrot.lane.b32.xlu0 %v1015, 32
        %v1018 = vpop.permute.xlu0 %1017
        %v1020 = vsel %vm438, %v1018, 0
        %1022 = vmatpush.bf16.msra.mxu0 0
        %1023 = vmatpush.bf16.msra.mxu0 0
        %1024 = vmatpush.bf16.msra.mxu0 0
        %1025 = vmatpush.bf16.msra.mxu0 0
        %1026 = vmatpush.bf16.msra.mxu0 0
        %1027 = vmatpush.bf16.msra.mxu0 0
        %1028 = vmatpush.bf16.msra.mxu0 %v685
        %1029 = vmatpush.bf16.msra.mxu0 %v684
        %1030 = vmatmul.bf16.gmra.mxu0 %v1020
        %v1031 = vpop.f32.mrf.mxu0
        %v1032 = vadd.f32 0.0, %v1031
        %v1033 = vpop.f32.mrf.mxu0
        %v1034 = vadd.f32 0.0, %v1033
        %1035 = vdwg.mxu0
        %v1036 = vadd.f32 %v1013, %v1032
        %v1037 = vadd.f32 %v1014, %v1034
        %v1038 = vxor.u32 %v1036, 2147483648
        %v1039 = vxor.u32 %v1037, 2147483648
        %v1040 = vmul.f32 %v1038, 1.442695
        %v1041 = vpow.pop %v1040
        %v1042 = vmul.f32 %v1039, 1.442695
        %v1043 = vpow.pop %v1042
        %v1044 = vadd.f32 %v1041, 1.0
        %v1045 = vadd.f32 %v1043, 1.0
        %v1046 = vrcp.pop %v1044
        %v1047 = vmul.f32 %v1044, %v1046
        %v1048 = vsub.f32 1.0, %v1047
        %v1049 = vmul.f32 %v1046, %v1048
        %v1050 = vadd.f32 %v1046, %v1049
        %vm1051 = vweird.f32 %v1044
        %vm1052 = vweird.f32 %v1046
        %vm1053 = vmor %vm1051, %vm1052
        %v1054 = vsel %vm1053, %v1046, %v1050
        %v1055 = vand.u32 2147483647, %v1044
        %vm1056 = vcmp.eq.f32.partialorder %v1055, 8.507059e+37
        %v1057 = vand.u32 %v1044, 2147483648
        %v1058 = vor.u32 1.1754944e-38, %v1057
        %v1059 = vsel %vm1056, %v1058, %v1054
        %v1060 = vmul.f32 1.0, %v1059
        %v1061 = vrcp.pop %v1045
        %v1062 = vmul.f32 %v1045, %v1061
        %v1063 = vsub.f32 1.0, %v1062
        %v1064 = vmul.f32 %v1061, %v1063
        %v1065 = vadd.f32 %v1061, %v1064
        %vm1066 = vweird.f32 %v1045
        %vm1067 = vweird.f32 %v1061
        %vm1068 = vmor %vm1066, %vm1067
        %v1069 = vsel %vm1068, %v1061, %v1065
        %v1070 = vand.u32 2147483647, %v1045
        %vm1071 = vcmp.eq.f32.partialorder %v1070, 8.507059e+37
        %v1072 = vand.u32 %v1045, 2147483648
        %v1073 = vor.u32 1.1754944e-38, %v1072
        %v1074 = vsel %vm1071, %v1073, %v1069
        %v1075 = vmul.f32 1.0, %v1074
        %v1076 = vtanh.pop %v1036
        %v1077 = vtanh.pop %v1037
        %v1078 = vmul.f32 %v1060, %v993
        %v1079 = vmul.f32 %v1075, %v994
        %1082 = vrot.lane.b32.xlu0 %v1076, 64
        %v1083 = vpop.permute.xlu0 %1082
        %1084 = vrot.lane.b32.xlu0 %v1077, 64
        %v1085 = vpop.permute.xlu0 %1084
        %v1088 = vmul.f32 %v1060, %v1083
        %v1089 = vmul.f32 %v1075, %v1085
        %1092 = vrot.lane.b32.xlu0 %v1088, 32
        %v1093 = vpop.permute.xlu0 %1092
        %1094 = vrot.lane.b32.xlu0 %v1089, 32
        %v1095 = vpop.permute.xlu0 %1094
        %v1098 = vadd.f32 %v1078, %v1093
        %v1099 = vadd.f32 %v1079, %v1095
        %v1100 = vtanh.pop %v1098
        %v1101 = vtanh.pop %v1099
        %1104 = vrot.lane.b32.xlu0 %v1100, 64
        %v1105 = vpop.permute.xlu0 %1104
        %1106 = vrot.lane.b32.xlu0 %v1101, 64
        %v1107 = vpop.permute.xlu0 %1106
        %v1110 = vmul.f32 %v1060, %v1105
        %v1111 = vmul.f32 %v1075, %v1107
        %s1112 = sadd.s32 %s666, 4
        %v1113 = vstv %s1112
        %vm1114 = vcmp.eq.s32.totalorder %v662, %v1113
        %vm1115 = vcmp.eq.s32.totalorder %v665, %v1113
        %v1116 = vsel %vm1114, %v1110, %v1011
        %v1117 = vsel %vm1115, %v1111, %v1012
        %v1118 = vld [vmem:[%s567] sm:$0xff]
        %v1119 = vld [vmem:[%s567 + $0x8] sm:$0xff]
        %v1120 = vpack.c.bf16 %v1111, %v1110
        %1122 = vrot.lane.b32.xlu0 %v1120, 32
        %v1123 = vpop.permute.xlu0 %1122
        %v1125 = vsel %vm438, %v1123, 0
        %1127 = vmatpush.bf16.msra.mxu0 0
        %1128 = vmatpush.bf16.msra.mxu0 0
        %1129 = vmatpush.bf16.msra.mxu0 0
        %1130 = vmatpush.bf16.msra.mxu0 0
        %1131 = vmatpush.bf16.msra.mxu0 0
        %1132 = vmatpush.bf16.msra.mxu0 0
        %1133 = vmatpush.bf16.msra.mxu0 %v685
        %1134 = vmatpush.bf16.msra.mxu0 %v684
        %1135 = vmatmul.bf16.gmra.mxu0 %v1125
        %v1136 = vpop.f32.mrf.mxu0
        %v1137 = vadd.f32 0.0, %v1136
        %v1138 = vpop.f32.mrf.mxu0
        %v1139 = vadd.f32 0.0, %v1138
        %1140 = vdwg.mxu0
        %v1141 = vadd.f32 %v1118, %v1137
        %v1142 = vadd.f32 %v1119, %v1139
        %v1143 = vxor.u32 %v1141, 2147483648
        %v1144 = vxor.u32 %v1142, 2147483648
        %v1145 = vmul.f32 %v1143, 1.442695
        %v1146 = vpow.pop %v1145
        %v1147 = vmul.f32 %v1144, 1.442695
        %v1148 = vpow.pop %v1147
        %v1149 = vadd.f32 %v1146, 1.0
        %v1150 = vadd.f32 %v1148, 1.0
        %v1151 = vrcp.pop %v1149
        %v1152 = vmul.f32 %v1149, %v1151
        %v1153 = vsub.f32 1.0, %v1152
        %v1154 = vmul.f32 %v1151, %v1153
        %v1155 = vadd.f32 %v1151, %v1154
        %vm1156 = vweird.f32 %v1149
        %vm1157 = vweird.f32 %v1151
        %vm1158 = vmor %vm1156, %vm1157
        %v1159 = vsel %vm1158, %v1151, %v1155
        %v1160 = vand.u32 2147483647, %v1149
        %vm1161 = vcmp.eq.f32.partialorder %v1160, 8.507059e+37
        %v1162 = vand.u32 %v1149, 2147483648
        %v1163 = vor.u32 1.1754944e-38, %v1162
        %v1164 = vsel %vm1161, %v1163, %v1159
        %v1165 = vmul.f32 1.0, %v1164
        %v1166 = vrcp.pop %v1150
        %v1167 = vmul.f32 %v1150, %v1166
        %v1168 = vsub.f32 1.0, %v1167
        %v1169 = vmul.f32 %v1166, %v1168
        %v1170 = vadd.f32 %v1166, %v1169
        %vm1171 = vweird.f32 %v1150
        %vm1172 = vweird.f32 %v1166
        %vm1173 = vmor %vm1171, %vm1172
        %v1174 = vsel %vm1173, %v1166, %v1170
        %v1175 = vand.u32 2147483647, %v1150
        %vm1176 = vcmp.eq.f32.partialorder %v1175, 8.507059e+37
        %v1177 = vand.u32 %v1150, 2147483648
        %v1178 = vor.u32 1.1754944e-38, %v1177
        %v1179 = vsel %vm1176, %v1178, %v1174
        %v1180 = vmul.f32 1.0, %v1179
        %v1181 = vtanh.pop %v1141
        %v1182 = vtanh.pop %v1142
        %v1183 = vmul.f32 %v1165, %v1098
        %v1184 = vmul.f32 %v1180, %v1099
        %1187 = vrot.lane.b32.xlu0 %v1181, 64
        %v1188 = vpop.permute.xlu0 %1187
        %1189 = vrot.lane.b32.xlu0 %v1182, 64
        %v1190 = vpop.permute.xlu0 %1189
        %v1193 = vmul.f32 %v1165, %v1188
        %v1194 = vmul.f32 %v1180, %v1190
        %1197 = vrot.lane.b32.xlu0 %v1193, 32
        %v1198 = vpop.permute.xlu0 %1197
        %1199 = vrot.lane.b32.xlu0 %v1194, 32
        %v1200 = vpop.permute.xlu0 %1199
        %v1203 = vadd.f32 %v1183, %v1198
        %v1204 = vadd.f32 %v1184, %v1200
        %v1205 = vtanh.pop %v1203
        %v1206 = vtanh.pop %v1204
        %1209 = vrot.lane.b32.xlu0 %v1205, 64
        %v1210 = vpop.permute.xlu0 %1209
        %1211 = vrot.lane.b32.xlu0 %v1206, 64
        %v1212 = vpop.permute.xlu0 %1211
        %v1215 = vmul.f32 %v1165, %v1210
        %v1216 = vmul.f32 %v1180, %v1212
        %s1217 = sadd.s32 %s666, 5
        %v1218 = vstv %s1217
        %vm1219 = vcmp.eq.s32.totalorder %v662, %v1218
        %vm1220 = vcmp.eq.s32.totalorder %v665, %v1218
        %v1221 = vsel %vm1219, %v1215, %v1116
        %v1222 = vsel %vm1220, %v1216, %v1117
        %v1223 = vld [vmem:[%s595] sm:$0xff]
        %v1224 = vld [vmem:[%s595 + $0x8] sm:$0xff]
        %v1225 = vpack.c.bf16 %v1216, %v1215
        %1227 = vrot.lane.b32.xlu0 %v1225, 32
        %v1228 = vpop.permute.xlu0 %1227
        %v1230 = vsel %vm438, %v1228, 0
        %1232 = vmatpush.bf16.msra.mxu0 0
        %1233 = vmatpush.bf16.msra.mxu0 0
        %1234 = vmatpush.bf16.msra.mxu0 0
        %1235 = vmatpush.bf16.msra.mxu0 0
        %1236 = vmatpush.bf16.msra.mxu0 0
        %1237 = vmatpush.bf16.msra.mxu0 0
        %1238 = vmatpush.bf16.msra.mxu0 %v685
        %1239 = vmatpush.bf16.msra.mxu0 %v684
        %1240 = vmatmul.bf16.gmra.mxu0 %v1230
        %v1241 = vpop.f32.mrf.mxu0
        %v1242 = vadd.f32 0.0, %v1241
        %v1243 = vpop.f32.mrf.mxu0
        %v1244 = vadd.f32 0.0, %v1243
        %1245 = vdwg.mxu0
        %v1246 = vadd.f32 %v1223, %v1242
        %v1247 = vadd.f32 %v1224, %v1244
        %v1248 = vxor.u32 %v1246, 2147483648
        %v1249 = vxor.u32 %v1247, 2147483648
        %v1250 = vmul.f32 %v1248, 1.442695
        %v1251 = vpow.pop %v1250
        %v1252 = vmul.f32 %v1249, 1.442695
        %v1253 = vpow.pop %v1252
        %v1254 = vadd.f32 %v1251, 1.0
        %v1255 = vadd.f32 %v1253, 1.0
        %v1256 = vrcp.pop %v1254
        %v1257 = vmul.f32 %v1254, %v1256
        %v1258 = vsub.f32 1.0, %v1257
        %v1259 = vmul.f32 %v1256, %v1258
        %v1260 = vadd.f32 %v1256, %v1259
        %vm1261 = vweird.f32 %v1254
        %vm1262 = vweird.f32 %v1256
        %vm1263 = vmor %vm1261, %vm1262
        %v1264 = vsel %vm1263, %v1256, %v1260
        %v1265 = vand.u32 2147483647, %v1254
        %vm1266 = vcmp.eq.f32.partialorder %v1265, 8.507059e+37
        %v1267 = vand.u32 %v1254, 2147483648
        %v1268 = vor.u32 1.1754944e-38, %v1267
        %v1269 = vsel %vm1266, %v1268, %v1264
        %v1270 = vmul.f32 1.0, %v1269
        %v1271 = vrcp.pop %v1255
        %v1272 = vmul.f32 %v1255, %v1271
        %v1273 = vsub.f32 1.0, %v1272
        %v1274 = vmul.f32 %v1271, %v1273
        %v1275 = vadd.f32 %v1271, %v1274
        %vm1276 = vweird.f32 %v1255
        %vm1277 = vweird.f32 %v1271
        %vm1278 = vmor %vm1276, %vm1277
        %v1279 = vsel %vm1278, %v1271, %v1275
        %v1280 = vand.u32 2147483647, %v1255
        %vm1281 = vcmp.eq.f32.partialorder %v1280, 8.507059e+37
        %v1282 = vand.u32 %v1255, 2147483648
        %v1283 = vor.u32 1.1754944e-38, %v1282
        %v1284 = vsel %vm1281, %v1283, %v1279
        %v1285 = vmul.f32 1.0, %v1284
        %v1286 = vtanh.pop %v1246
        %v1287 = vtanh.pop %v1247
        %v1288 = vmul.f32 %v1270, %v1203
        %v1289 = vmul.f32 %v1285, %v1204
        %1292 = vrot.lane.b32.xlu0 %v1286, 64
        %v1293 = vpop.permute.xlu0 %1292
        %1294 = vrot.lane.b32.xlu0 %v1287, 64
        %v1295 = vpop.permute.xlu0 %1294
        %v1298 = vmul.f32 %v1270, %v1293
        %v1299 = vmul.f32 %v1285, %v1295
        %1302 = vrot.lane.b32.xlu0 %v1298, 32
        %v1303 = vpop.permute.xlu0 %1302
        %1304 = vrot.lane.b32.xlu0 %v1299, 32
        %v1305 = vpop.permute.xlu0 %1304
        %v1308 = vadd.f32 %v1288, %v1303
        %v1309 = vadd.f32 %v1289, %v1305
        %v1310 = vtanh.pop %v1308
        %v1311 = vtanh.pop %v1309
        %1314 = vrot.lane.b32.xlu0 %v1310, 64
        %v1315 = vpop.permute.xlu0 %1314
        %1316 = vrot.lane.b32.xlu0 %v1311, 64
        %v1317 = vpop.permute.xlu0 %1316
        %v1320 = vmul.f32 %v1270, %v1315
        %v1321 = vmul.f32 %v1285, %v1317
        %s1322 = sadd.s32 %s666, 6
        %v1323 = vstv %s1322
        %vm1324 = vcmp.eq.s32.totalorder %v662, %v1323
        %vm1325 = vcmp.eq.s32.totalorder %v665, %v1323
        %v1326 = vsel %vm1324, %v1320, %v1221
        %v1327 = vsel %vm1325, %v1321, %v1222
        %v1328 = vld [vmem:[%s623] sm:$0xff]
        %v1329 = vld [vmem:[%s623 + $0x8] sm:$0xff]
        %v1330 = vpack.c.bf16 %v1321, %v1320
        %1332 = vrot.lane.b32.xlu0 %v1330, 32
        %v1333 = vpop.permute.xlu0 %1332
        %v1335 = vsel %vm438, %v1333, 0
        %1337 = vmatpush.bf16.msra.mxu0 0
        %1338 = vmatpush.bf16.msra.mxu0 0
        %1339 = vmatpush.bf16.msra.mxu0 0
        %1340 = vmatpush.bf16.msra.mxu0 0
        %1341 = vmatpush.bf16.msra.mxu0 0
        %1342 = vmatpush.bf16.msra.mxu0 0
        %1343 = vmatpush.bf16.msra.mxu0 %v685
        %1344 = vmatpush.bf16.msra.mxu0 %v684
        %1345 = vmatmul.bf16.gmra.mxu0 %v1335
        %v1346 = vpop.f32.mrf.mxu0
        %v1347 = vadd.f32 0.0, %v1346
        %v1348 = vpop.f32.mrf.mxu0
        %v1349 = vadd.f32 0.0, %v1348
        %1350 = vdwg.mxu0
        %v1351 = vadd.f32 %v1328, %v1347
        %v1352 = vadd.f32 %v1329, %v1349
        %v1353 = vxor.u32 %v1351, 2147483648
        %v1354 = vxor.u32 %v1352, 2147483648
        %v1355 = vmul.f32 %v1353, 1.442695
        %v1356 = vpow.pop %v1355
        %v1357 = vmul.f32 %v1354, 1.442695
        %v1358 = vpow.pop %v1357
        %v1359 = vadd.f32 %v1356, 1.0
        %v1360 = vadd.f32 %v1358, 1.0
        %v1361 = vrcp.pop %v1359
        %v1362 = vmul.f32 %v1359, %v1361
        %v1363 = vsub.f32 1.0, %v1362
        %v1364 = vmul.f32 %v1361, %v1363
        %v1365 = vadd.f32 %v1361, %v1364
        %vm1366 = vweird.f32 %v1359
        %vm1367 = vweird.f32 %v1361
        %vm1368 = vmor %vm1366, %vm1367
        %v1369 = vsel %vm1368, %v1361, %v1365
        %v1370 = vand.u32 2147483647, %v1359
        %vm1371 = vcmp.eq.f32.partialorder %v1370, 8.507059e+37
        %v1372 = vand.u32 %v1359, 2147483648
        %v1373 = vor.u32 1.1754944e-38, %v1372
        %v1374 = vsel %vm1371, %v1373, %v1369
        %v1375 = vmul.f32 1.0, %v1374
        %v1376 = vrcp.pop %v1360
        %v1377 = vmul.f32 %v1360, %v1376
        %v1378 = vsub.f32 1.0, %v1377
        %v1379 = vmul.f32 %v1376, %v1378
        %v1380 = vadd.f32 %v1376, %v1379
        %vm1381 = vweird.f32 %v1360
        %vm1382 = vweird.f32 %v1376
        %vm1383 = vmor %vm1381, %vm1382
        %v1384 = vsel %vm1383, %v1376, %v1380
        %v1385 = vand.u32 2147483647, %v1360
        %vm1386 = vcmp.eq.f32.partialorder %v1385, 8.507059e+37
        %v1387 = vand.u32 %v1360, 2147483648
        %v1388 = vor.u32 1.1754944e-38, %v1387
        %v1389 = vsel %vm1386, %v1388, %v1384
        %v1390 = vmul.f32 1.0, %v1389
        %v1391 = vtanh.pop %v1351
        %v1392 = vtanh.pop %v1352
        %v1393 = vmul.f32 %v1375, %v1308
        %v1394 = vmul.f32 %v1390, %v1309
        %1397 = vrot.lane.b32.xlu0 %v1391, 64
        %v1398 = vpop.permute.xlu0 %1397
        %1399 = vrot.lane.b32.xlu0 %v1392, 64
        %v1400 = vpop.permute.xlu0 %1399
        %v1403 = vmul.f32 %v1375, %v1398
        %v1404 = vmul.f32 %v1390, %v1400
        %1407 = vrot.lane.b32.xlu0 %v1403, 32
        %v1408 = vpop.permute.xlu0 %1407
        %1409 = vrot.lane.b32.xlu0 %v1404, 32
        %v1410 = vpop.permute.xlu0 %1409
        %v1413 = vadd.f32 %v1393, %v1408
        %v1414 = vadd.f32 %v1394, %v1410
        %v1415 = vtanh.pop %v1413
        %v1416 = vtanh.pop %v1414
        %1419 = vrot.lane.b32.xlu0 %v1415, 64
        %v1420 = vpop.permute.xlu0 %1419
        %1421 = vrot.lane.b32.xlu0 %v1416, 64
        %v1422 = vpop.permute.xlu0 %1421
        %v1425 = vmul.f32 %v1375, %v1420
        %v1426 = vmul.f32 %v1390, %v1422
        %s1427 = sadd.s32 %s666, 7
        %v1428 = vstv %s1427
        %vm1429 = vcmp.eq.s32.totalorder %v662, %v1428
        %vm1430 = vcmp.eq.s32.totalorder %v665, %v1428
        %v1431 = vsel %vm1429, %v1425, %v1326
        %v1432 = vsel %vm1430, %v1426, %v1327
        %v1433 = vld [vmem:[%s651] sm:$0xff]
        %v1434 = vld [vmem:[%s651 + $0x8] sm:$0xff]
        %v1435 = vpack.c.bf16 %v1426, %v1425
        %1437 = vrot.lane.b32.xlu0 %v1435, 32
        %v1438 = vpop.permute.xlu0 %1437
        %v1440 = vsel %vm438, %v1438, 0
        %1442 = vmatpush.bf16.msra.mxu0 0
        %1443 = vmatpush.bf16.msra.mxu0 0
        %1444 = vmatpush.bf16.msra.mxu0 0
        %1445 = vmatpush.bf16.msra.mxu0 0
        %1446 = vmatpush.bf16.msra.mxu0 0
        %1447 = vmatpush.bf16.msra.mxu0 0
        %1448 = vmatpush.bf16.msra.mxu0 %v685
        %1449 = vmatpush.bf16.msra.mxu0 %v684
        %1450 = vmatmul.bf16.gmra.mxu0 %v1440
        %v1451 = vpop.f32.mrf.mxu0
        %v1452 = vadd.f32 0.0, %v1451
        %v1453 = vpop.f32.mrf.mxu0
        %v1454 = vadd.f32 0.0, %v1453
        %1455 = vdwg.mxu0
        %v1456 = vadd.f32 %v1433, %v1452
        %v1457 = vadd.f32 %v1434, %v1454
        %v1458 = vxor.u32 %v1456, 2147483648
        %v1459 = vxor.u32 %v1457, 2147483648
        %v1460 = vmul.f32 %v1458, 1.442695
        %v1461 = vpow.pop %v1460
        %v1462 = vmul.f32 %v1459, 1.442695
        %v1463 = vpow.pop %v1462
        %v1464 = vadd.f32 %v1461, 1.0
        %v1465 = vadd.f32 %v1463, 1.0
        %v1466 = vrcp.pop %v1464
        %v1467 = vmul.f32 %v1464, %v1466
        %v1468 = vsub.f32 1.0, %v1467
        %v1469 = vmul.f32 %v1466, %v1468
        %v1470 = vadd.f32 %v1466, %v1469
        %vm1471 = vweird.f32 %v1464
        %vm1472 = vweird.f32 %v1466
        %vm1473 = vmor %vm1471, %vm1472
        %v1474 = vsel %vm1473, %v1466, %v1470
        %v1475 = vand.u32 2147483647, %v1464
        %vm1476 = vcmp.eq.f32.partialorder %v1475, 8.507059e+37
        %v1477 = vand.u32 %v1464, 2147483648
        %v1478 = vor.u32 1.1754944e-38, %v1477
        %v1479 = vsel %vm1476, %v1478, %v1474
        %v1480 = vmul.f32 1.0, %v1479
        %v1481 = vrcp.pop %v1465
        %v1482 = vmul.f32 %v1465, %v1481
        %v1483 = vsub.f32 1.0, %v1482
        %v1484 = vmul.f32 %v1481, %v1483
        %v1485 = vadd.f32 %v1481, %v1484
        %vm1486 = vweird.f32 %v1465
        %vm1487 = vweird.f32 %v1481
        %vm1488 = vmor %vm1486, %vm1487
        %v1489 = vsel %vm1488, %v1481, %v1485
        %v1490 = vand.u32 2147483647, %v1465
        %vm1491 = vcmp.eq.f32.partialorder %v1490, 8.507059e+37
        %v1492 = vand.u32 %v1465, 2147483648
        %v1493 = vor.u32 1.1754944e-38, %v1492
        %v1494 = vsel %vm1491, %v1493, %v1489
        %v1495 = vmul.f32 1.0, %v1494
        %v1496 = vtanh.pop %v1456
        %v1497 = vtanh.pop %v1457
        %v1498 = vmul.f32 %v1480, %v1413
        %v1499 = vmul.f32 %v1495, %v1414
        %1502 = vrot.lane.b32.xlu0 %v1496, 64
        %v1503 = vpop.permute.xlu0 %1502
        %1504 = vrot.lane.b32.xlu0 %v1497, 64
        %v1505 = vpop.permute.xlu0 %1504
        %v1508 = vmul.f32 %v1480, %v1503
        %v1509 = vmul.f32 %v1495, %v1505
        %1512 = vrot.lane.b32.xlu0 %v1508, 32
        %v1513 = vpop.permute.xlu0 %1512
        %1514 = vrot.lane.b32.xlu0 %v1509, 32
        %v1515 = vpop.permute.xlu0 %1514
        %v1518 = vadd.f32 %v1498, %v1513
        %v1519 = vadd.f32 %v1499, %v1515
        %v1520 = vtanh.pop %v1518
        %v1521 = vtanh.pop %v1519
        %1524 = vrot.lane.b32.xlu0 %v1520, 64
        %v1525 = vpop.permute.xlu0 %1524
        %1526 = vrot.lane.b32.xlu0 %v1521, 64
        %v1527 = vpop.permute.xlu0 %1526
        %v1530 = vmul.f32 %v1480, %v1525
        %v1531 = vmul.f32 %v1495, %v1527
        %s1532 = sadd.s32 %s666, 8
        %v1533 = vstv %s1532
        %vm1534 = vcmp.eq.s32.totalorder %v662, %v1533
        %vm1535 = vcmp.eq.s32.totalorder %v665, %v1533
        %v1536 = vsel %vm1534, %v1530, %v1431
        %v1537 = vsel %vm1535, %v1531, %v1432
        %1540 = vrot.lane.b32.xlu0 %v1530, 32
        %v1541 = vpop.permute.xlu0 %1540
        %1542 = vrot.lane.b32.xlu0 %v1531, 32
        %v1543 = vpop.permute.xlu0 %1542
        %1546 = vst.msk [vmem:[#allocation3] sm:$0xff] %vm438, %v1541
        %1547 = vst.msk [vmem:[#allocation3 + $0x8] sm:$0xff] %vm438, %v1543
        %1550 = vrot.lane.b32.xlu0 %v1518, 96
        %v1551 = vpop.permute.xlu0 %1550
        %1552 = vrot.lane.b32.xlu0 %v1519, 96
        %v1553 = vpop.permute.xlu0 %1552
        %1556 = vst.msk [vmem:[#allocation4] sm:$0xff] %vm438, %v1551
        %1557 = vst.msk [vmem:[#allocation4 + $0x8] sm:$0xff] %vm438, %v1553
        %1560 = vrot.lane.b32.xlu0 %v1536, 32
        %v1561 = vpop.permute.xlu0 %1560
        %1562 = vrot.lane.b32.xlu0 %v1537, 32
        %v1563 = vpop.permute.xlu0 %1562
        %1566 = vst.msk [vmem:[#allocation5] sm:$0xff] %vm438, %v1561
        %1567 = vst.msk [vmem:[#allocation5 + $0x8] sm:$0xff] %vm438, %v1563
        %p1568 = scmp.eq.s32.totalorder %s30, 1
        // Predicated region
        $region65: #{tpu_custom_call.1} parent=47 // pred_check
          %p1569 = pneg %p1568
        $region66: #{tpu_custom_call.1} parent=47 // pred_check_branch
          %1571 = sbr.rel (%p1569) target = $region68
        $region67: #{tpu_custom_call.1} parent=47 // pred_region
          %v1572 = vld [vmem:[%s5] sm:$0xff]
          %v1573 = vld [vmem:[%s5 + $0x8] sm:$0xff]
          %v1574 = vld [vmem:[%s5 + $0x10] sm:$0xff]
          %v1575 = vld [vmem:[%s5 + $0x18] sm:$0xff]
          %v1576 = vld [vmem:[%s6] sm:$0x1]
          %v1578 = vperm.slane %v1576, 0
          %v1580 = vsel %vm438, %v1561, 0
          %v1582 = vsel %vm438, %v1563, 0
          %1584 = vmatpush.msra.mxu0 0.0
          %1585 = vmatpush.msra.mxu0 0.0
          %1586 = vmatpush.msra.mxu0 0.0
          %1587 = vmatpush.msra.mxu0 0.0
          %1588 = vmatpush.msra.mxu0 0.0
          %1589 = vmatpush.msra.mxu0 0.0
          %1590 = vmatpush.msra.mxu0 0.0
          %1591 = vmatpush.msra.mxu0 0.0
          %1592 = vmatpush.msra.mxu0 0.0
          %1593 = vmatpush.msra.mxu0 0.0
          %1594 = vmatpush.msra.mxu0 0.0
          %1595 = vmatpush.msra.mxu0 0.0
          %1596 = vmatpush.msra.mxu0 %v1575
          %1597 = vmatpush.msra.mxu0 %v1574
          %1598 = vmatpush.msra.mxu0 %v1573
          %1599 = vmatpush.msra.mxu0 %v1572
          %1600 = vmatmul.f32.gmra.mxu0 %v1580
          %v1601 = vpop.f32.mrf.mxu0
          %v1602 = vadd.f32 %v1578, %v1601
          %1603 = vmatmul.f32.gmra.mxu0 %v1582
          %v1604 = vpop.f32.mrf.mxu0
          %v1605 = vadd.f32 %v1578, %v1604
          %1606 = vdwg.mxu0
          %1607 = vst [vmem:[%s389] sm:$0xff] %v1602
          %1608 = vst [vmem:[%s389 + $0x8] sm:$0xff] %v1605
        $region68: #{tpu_custom_call.1} parent=47 // pred_fallthru
          _
        %s1609 = sand.u32 %s204, 1
        %s1610 = scalar_lea.sflag [#allocation8], %s1609
        %s1611 = sand.u32 %s204, 1
        %s1612 = smul.addr %s1611, 16
        %s1613 = scalar_lea.vmem [#allocation12], %s1612
        // Predicated region
        $region69: #{tpu_custom_call.1} parent=47 // pred_check
          %p1614 = pneg %p214
        $region70: #{tpu_custom_call.1} parent=47 // pred_check_branch
          %1616 = sbr.rel (%p1614) target = $region72
        $region71: #{tpu_custom_call.1} parent=47 // pred_region
          %s1617 = smul.u32 2, %s29
          %1619 = vsyncadd %s1610, 0
          %s1620 = smul.addr %s1617, 8
          %s1621 = scalar_lea.hbm %s7, %s1620
          %s1622 = sshll.u32 %s1613, 4
          %s1623 = int_to_ptr.vmem [resolvable:$true] %s1622
          %s1624 = sshll.u32 %s1621, 4
          %s1625 = int_to_ptr.hbm [resolvable:$true] %s1624
          %1630 = dma.vmem_to_hbm [thread:$0]  %s1623, 256, %s1625, %s1610, 128, 128, 8
        $region72: #{tpu_custom_call.1} parent=47 // pred_fallthru
          _
      $region48: #{tpu_custom_call.1} parent=5 // pred_fallthru
        _
      %p1631 = scmp.le.s32.totalorder 2, %s20
      // Predicated region
      $region73: #{tpu_custom_call.1} parent=5 // pred_check
        %p1632 = pneg %p1631
      $region74: #{tpu_custom_call.1} parent=5 // pred_check_branch
        %1634 = sbr.rel (%p1632) target = $region76
      $region75: #{tpu_custom_call.1} parent=5 // pred_region
        %s1635 = ssub.s32 %s20, 2
        // Predicated region
        $region77: #{tpu_custom_call.1} parent=75 // pred_check
          %p1636 = pneg %p220
        $region78: #{tpu_custom_call.1} parent=75 // pred_check_branch
          %1638 = sbr.rel (%p1636) target = $region80
        $region79: #{tpu_custom_call.1} parent=75 // pred_region
          %s1639 = sand.u32 %s205, 1
          %s1640 = scalar_lea.sflag [#allocation8], %s1639
          %s1641 = sand.u32 %s205, 1
          %s1642 = smul.addr %s1641, 16
          %s1643 = scalar_lea.vmem [#allocation12], %s1642
          %1645 = dma.done %s1640, 256
        $region80: #{tpu_custom_call.1} parent=75 // pred_fallthru
          _
      $region76: #{tpu_custom_call.1} parent=5 // pred_fallthru
        _
    $region6: #{tpu_custom_call.1} parent=1 // loop_footer
      %s24 = sadd.s32 1, %s20
    $region7: #{tpu_custom_call.1} parent=1 // loop_footer_branch
      %19 = sbr.rel target = $region3
    $region8: #{tpu_custom_call.1} parent=1 // loop_exit
      _
    %1646 = vsyncpa [#allocation7], 1
    %s1647 = scalar_lea.sflag [#allocation7], 1
    %1648 = vsyncpa %s1647, 1
    %1649 = vsyncpa [#allocation10], 1
    %1650 = vsyncpa [#allocation8], 1
    %s1651 = scalar_lea.sflag [#allocation8], 1
    %1652 = vsyncpa %s1651, 1

</llo_original>
